<compile_context>
chip_gen: v5e
topology: v5e:2x2
jax: 0.10.0
libtpu: 0.0.40
codegen_flags: <defaults>
</compile_context>

<pallas_src>
import jax
import jax.numpy as jnp
from jax import lax
from jax.experimental import pallas as pl
from jax.experimental.pallas import tpu as pltpu


def _round_up(n, m):
    return ((n + m - 1) // m) * m


def _unroller_kernel(x_ref, wih_ref, whh_ref, b_ref, wlin_ref, blin_ref,
                     out_ref, gx_sc, hs_sc):
    # Shapes (all padded):
    #   x_ref   : (S, Bp, Ip)      wih_ref : (Ip, 4*Hp)    whh_ref : (Hp, 4*Hp)
    #   b_ref   : (1, 4*Hp)        wlin_ref: (Hp, Op)      blin_ref: (1, Op)
    #   out_ref : (S, Bp, Op)      gx_sc   : (S, Bp, 4*Hp) hs_sc   : (S, Bp, Hp)
    S, Bp, Ip = x_ref.shape
    Hp = whh_ref.shape[0]
    Op = wlin_ref.shape[1]

    # --- Stage 1: x projections for all time steps in one MXU matmul. -------
    x_all = x_ref[...].reshape(S * Bp, Ip)
    gx = jnp.dot(x_all, wih_ref[...], preferred_element_type=jnp.float32)
    gx_sc[...] = (gx + b_ref[...]).reshape(S, Bp, 4 * Hp)

    w_hh = whh_ref[...]  # resident across the whole recurrence

    # --- Stage 2: serial recurrence; only h @ W_hh is on the critical path. -
    def step(t, carry):
        h, c = carry
        gates = gx_sc[t] + jnp.dot(h, w_hh, preferred_element_type=jnp.float32)
        # Gate-major, 128-lane-aligned slices (PyTorch gate order i, f, g, o).
        i_g = jax.nn.sigmoid(gates[:, 0 * Hp:1 * Hp])
        f_g = jax.nn.sigmoid(gates[:, 1 * Hp:2 * Hp])
        g_g = jnp.tanh(gates[:, 2 * Hp:3 * Hp])
        o_g = jax.nn.sigmoid(gates[:, 3 * Hp:4 * Hp])
        c_new = f_g * c + i_g * g_g
        h_new = o_g * jnp.tanh(c_new)
        hs_sc[t] = h_new
        return h_new, c_new

    h0 = jnp.zeros((Bp, Hp), jnp.float32)
    c0 = jnp.zeros((Bp, Hp), jnp.float32)
    lax.fori_loop(0, S, step, (h0, c0), unroll=True)

    # --- Stage 3: Linear + ReLU for all steps, single lane-dense store. -----
    h_all = hs_sc[...].reshape(S * Bp, Hp)
    y = jnp.dot(h_all, wlin_ref[...], preferred_element_type=jnp.float32)
    y = jnp.maximum(y + blin_ref[...], 0.0)
    out_ref[...] = y.reshape(S, Bp, Op)


def unroller_forward(x, packed):
    """x: (batch, seq, input_size) f32 -> (batch, seq, output_size) f32."""
    B, S, In = x.shape
    Ip = packed["w_ih"].shape[0]
    Hp = packed["w_hh"].shape[0]
    Op = packed["w_lin"].shape[1]
    O = packed["output_size"]
    Bp = max(8, _round_up(B, 8))

    # Layout + zero-pad to TPU tiles (tiny shaping ops; XLA fuses them).
    x_sbi = jnp.transpose(x, (1, 0, 2)).astype(jnp.float32)        # (S, B, In)
    x_pad = jnp.pad(x_sbi, ((0, 0), (0, Bp - B), (0, Ip - In)))    # (S, Bp, Ip)

    out_pad = pl.pallas_call(
        _unroller_kernel,
        out_shape=jax.ShapeDtypeStruct((S, Bp, Op), jnp.float32),
        grid_spec=pltpu.PrefetchScalarGridSpec(
            num_scalar_prefetch=0,
            grid=(1,),
            in_specs=[
                pl.BlockSpec((S, Bp, Ip), lambda i: (0, 0, 0)),    # x
                pl.BlockSpec((Ip, 4 * Hp), lambda i: (0, 0)),      # W_ih^T (padded)
                pl.BlockSpec((Hp, 4 * Hp), lambda i: (0, 0)),      # W_hh^T (padded)
                pl.BlockSpec((1, 4 * Hp), lambda i: (0, 0)),       # b_ih + b_hh
                pl.BlockSpec((Hp, Op), lambda i: (0, 0)),          # W_lin^T (padded)
                pl.BlockSpec((1, Op), lambda i: (0, 0)),           # b_lin
            ],
            out_specs=pl.BlockSpec((S, Bp, Op), lambda i: (0, 0, 0)),
            scratch_shapes=[
                pltpu.VMEM((S, Bp, 4 * Hp), jnp.float32),  # precomputed x-gate proj
                pltpu.VMEM((S, Bp, Hp), jnp.float32),      # per-step hidden states
            ],
        ),
        compiler_params=pltpu.CompilerParams(
            dimension_semantics=("arbitrary",)),   # sequential recurrence
    )(x_pad, packed["w_ih"], packed["w_hh"], packed["b"],
      packed["w_lin"], packed["b_lin"])

    return jnp.transpose(out_pad[:, :B, :O], (1, 0, 2))            # (B, S, O)


def init_params(key, input_size, hidden_size, output_size):
    """PyTorch-style parameters: U(-1/sqrt(H), 1/sqrt(H)), nn.LSTM/nn.Linear layouts."""
    k = 1.0 / jnp.sqrt(jnp.float32(hidden_size))
    ks = jax.random.split(key, 6)
    w_ih = jax.random.uniform(ks[0], (4 * hidden_size, input_size), jnp.float32, -k, k)
    w_hh = jax.random.uniform(ks[1], (4 * hidden_size, hidden_size), jnp.float32, -k, k)
    b_ih = jax.random.uniform(ks[2], (4 * hidden_size,), jnp.float32, -k, k)
    b_hh = jax.random.uniform(ks[3], (4 * hidden_size,), jnp.float32, -k, k)
    w_lin = jax.random.uniform(ks[4], (output_size, hidden_size), jnp.float32, -k, k)
    b_lin = jax.random.uniform(ks[5], (output_size,), jnp.float32, -k, k)
    return (w_ih, w_hh, b_ih, b_hh, w_lin, b_lin)


def pack_params(raw, input_size, hidden_size, output_size):
    """Kernel layout: transposed, gate-major, lane/sublane tile-padded (zeros in pads)."""
    w_ih, w_hh, b_ih, b_hh, w_lin, b_lin = raw
    H = hidden_size
    Ip = _round_up(input_size, 128)
    Hp = _round_up(hidden_size, 128)
    Op = _round_up(output_size, 128)

    wih_t = jnp.zeros((Ip, 4 * Hp), jnp.float32)
    whh_t = jnp.zeros((Hp, 4 * Hp), jnp.float32)
    b = jnp.zeros((1, 4 * Hp), jnp.float32)
    for g in range(4):  # PyTorch gate order: i, f, g, o
        wih_t = wih_t.at[:input_size, g * Hp:g * Hp + H].set(w_ih[g * H:(g + 1) * H, :].T)
        whh_t = whh_t.at[:H, g * Hp:g * Hp + H].set(w_hh[g * H:(g + 1) * H, :].T)
        b = b.at[0, g * Hp:g * Hp + H].set(b_ih[g * H:(g + 1) * H] + b_hh[g * H:(g + 1) * H])
    wlin_t = jnp.zeros((Hp, Op), jnp.float32).at[:H, :output_size].set(w_lin.T)
    blin = jnp.zeros((1, Op), jnp.float32).at[0, :output_size].set(b_lin)

    return {"w_ih": wih_t, "w_hh": whh_t, "b": b, "w_lin": wlin_t, "b_lin": blin,
            "input_size": input_size, "hidden_size": hidden_size,
            "output_size": output_size}


def unroller_reference(x, raw):
    """Pure-JAX (lax.scan) reference of the same LSTM -> Linear -> ReLU, f32."""
    w_ih, w_hh, b_ih, b_hh, w_lin, b_lin = raw
    B = x.shape[0]
    H = w_hh.shape[1]
    hi = jax.lax.Precision.HIGHEST

    def step(carry, x_t):
        h, c = carry
        gates = (jnp.dot(x_t, w_ih.T, precision=hi)
                 + jnp.dot(h, w_hh.T, precision=hi) + b_ih + b_hh)
        i = jax.nn.sigmoid(gates[:, 0 * H:1 * H])
        f = jax.nn.sigmoid(gates[:, 1 * H:2 * H])
        g = jnp.tanh(gates[:, 2 * H:3 * H])
        o = jax.nn.sigmoid(gates[:, 3 * H:4 * H])
        c = f * c + i * g
        h = o * jnp.tanh(c)
        y = jnp.maximum(jnp.dot(h, w_lin.T, precision=hi) + b_lin, 0.0)
        return (h, c), y

    init = (jnp.zeros((B, H), jnp.float32), jnp.zeros((B, H), jnp.float32))
    _, ys = lax.scan(step, init, jnp.transpose(x, (1, 0, 2)))
    return jnp.transpose(ys, (1, 0, 2))


if __name__ == "__main__":
    batch, seq = 2, 8
    input_size, hidden_size, output_size = 8, 32, 16

    key = jax.random.PRNGKey(0)
    k_x, k_p = jax.random.split(key)
    x = jax.random.normal(k_x, (batch, seq, input_size), jnp.float32)
    raw = init_params(k_p, input_size, hidden_size, output_size)
    packed = pack_params(raw, input_size, hidden_size, output_size)

    out = unroller_forward(x, packed)
    out = jax.block_until_ready(out)

    ref = unroller_reference(x, raw)
    assert out.shape == (batch, seq, output_size)
    assert jnp.allclose(out, ref, atol=1e-3, rtol=1e-3), \
        f"max err {jnp.max(jnp.abs(out - ref))}"

    print("KERNEL_OK")
</pallas_src>

<mosaic_0001>
module attributes {stable_mosaic.version = 11 : i64} {
  func.func @_unroller_kernel(%arg0: i32, %arg1: memref<8x8x128xf32, #tpu.memory_space<vmem>>, %arg2: memref<128x512xf32, #tpu.memory_space<vmem>>, %arg3: memref<128x512xf32, #tpu.memory_space<vmem>>, %arg4: memref<1x512xf32, #tpu.memory_space<vmem>>, %arg5: memref<128x128xf32, #tpu.memory_space<vmem>>, %arg6: memref<1x128xf32, #tpu.memory_space<vmem>>, %arg7: memref<8x8x128xf32, #tpu.memory_space<vmem>>, %arg8: memref<8x8x512xf32, #tpu.memory_space<vmem>>, %arg9: memref<8x8x128xf32, #tpu.memory_space<vmem>>) attributes {dimension_semantics = [#tpu.dimension_semantics<arbitrary>], iteration_bounds = array<i64: 1>, scalar_prefetch = 0 : i64, scratch_operands = 2 : i64, tpu.core_type = #tpu.core_type<tc>, window_params = [{pipeline_mode = #tpu.pipeline_mode<synchronous>, transform_indices = @transform_0, window_bounds = array<i64: 8, 8, 128>}, {pipeline_mode = #tpu.pipeline_mode<synchronous>, transform_indices = @transform_1, window_bounds = array<i64: 128, 512>}, {pipeline_mode = #tpu.pipeline_mode<synchronous>, transform_indices = @transform_2, window_bounds = array<i64: 128, 512>}, {pipeline_mode = #tpu.pipeline_mode<synchronous>, transform_indices = @transform_3, window_bounds = array<i64: 1, 512>}, {pipeline_mode = #tpu.pipeline_mode<synchronous>, transform_indices = @transform_4, window_bounds = array<i64: 128, 128>}, {pipeline_mode = #tpu.pipeline_mode<synchronous>, transform_indices = @transform_5, window_bounds = array<i64: 1, 128>}, {pipeline_mode = #tpu.pipeline_mode<synchronous>, transform_indices = @transform_6, window_bounds = array<i64: 8, 8, 128>}]} {
    %c0 = arith.constant 0 : index
    %c0_0 = arith.constant 0 : index
    %c0_1 = arith.constant 0 : index
    %0 = vector.load %arg1[%c0, %c0_0, %c0_1] : memref<8x8x128xf32, #tpu.memory_space<vmem>>, vector<8x8x128xf32>
    %1 = vector.shape_cast %0 : vector<8x8x128xf32> to vector<64x128xf32>
    %c0_2 = arith.constant 0 : index
    %c0_3 = arith.constant 0 : index
    %2 = vector.load %arg2[%c0_2, %c0_3] : memref<128x512xf32, #tpu.memory_space<vmem>>, vector<128x512xf32>
    %cst = arith.constant dense<0.000000e+00> : vector<64x512xf32>
    %3 = tpu.matmul %1, %2, %cst {dimension_numbers = #tpu.dot_dimension_numbers<[1], [0], [0], [1], [0, 0, 1, 1], [], []>} : vector<64x128xf32>, vector<128x512xf32>, vector<64x512xf32> -> vector<64x512xf32>
    %c0_4 = arith.constant 0 : index
    %c0_5 = arith.constant 0 : index
    %4 = vector.load %arg4[%c0_4, %c0_5] : memref<1x512xf32, #tpu.memory_space<vmem>>, vector<1x512xf32>
    %5 = vector.broadcast %4 : vector<1x512xf32> to vector<64x512xf32>
    %6 = arith.addf %3, %5 : vector<64x512xf32>
    %7 = vector.shape_cast %6 : vector<64x512xf32> to vector<8x8x512xf32>
    %c0_6 = arith.constant 0 : index
    %c0_7 = arith.constant 0 : index
    %c0_8 = arith.constant 0 : index
    %8 = vector.load %arg8[%c0_6, %c0_7, %c0_8] : memref<8x8x512xf32, #tpu.memory_space<vmem>>, vector<8x8x512xf32>
    tpu.vector_store %arg8[%c0_6, %c0_7, %c0_8], %7 {strides = array<i32>} : memref<8x8x512xf32, #tpu.memory_space<vmem>>, vector<8x8x512xf32>,
    %c0_9 = arith.constant 0 : index
    %c0_10 = arith.constant 0 : index
    %9 = vector.load %arg3[%c0_9, %c0_10] : memref<128x512xf32, #tpu.memory_space<vmem>>, vector<128x512xf32>
    %cst_11 = arith.constant 0.000000e+00 : f32
    %10 = vector.broadcast %cst_11 : f32 to vector<8x128xf32>
    %cst_12 = arith.constant 0.000000e+00 : f32
    %11 = vector.broadcast %cst_12 : f32 to vector<8x128xf32>
    %c0_i32 = arith.constant 0 : i32
    %12 = arith.index_cast %c0_i32 : i32 to index
    %c0_13 = arith.constant 0 : index
    %c0_14 = arith.constant 0 : index
    %13 = vector.load %arg8[%12, %c0_13, %c0_14] : memref<8x8x512xf32, #tpu.memory_space<vmem>>, vector<1x8x512xf32>
    %14 = vector.shape_cast %13 : vector<1x8x512xf32> to vector<8x512xf32>
    %cst_15 = arith.constant dense<0.000000e+00> : vector<8x512xf32>
    %15 = tpu.matmul %10, %9, %cst_15 {dimension_numbers = #tpu.dot_dimension_numbers<[1], [0], [0], [1], [0, 0, 1, 1], [], []>} : vector<8x128xf32>, vector<128x512xf32>, vector<8x512xf32> -> vector<8x512xf32>
    %16 = arith.addf %14, %15 : vector<8x512xf32>
    %17 = vector.extract_strided_slice %16 {offsets = [0, 0], sizes = [8, 128], strides = [1, 1]} : vector<8x512xf32> to vector<8x128xf32>
    %18 = arith.negf %17 : vector<8x128xf32>
    %19 = math.exp %18 : vector<8x128xf32>
    %cst_16 = arith.constant 1.000000e+00 : f32
    %20 = vector.broadcast %cst_16 : f32 to vector<8x128xf32>
    %21 = arith.addf %20, %19 : vector<8x128xf32>
    %22 = arith.divf %20, %21 : vector<8x128xf32>
    %23 = vector.extract_strided_slice %16 {offsets = [0, 128], sizes = [8, 128], strides = [1, 1]} : vector<8x512xf32> to vector<8x128xf32>
    %24 = arith.negf %23 : vector<8x128xf32>
    %25 = math.exp %24 : vector<8x128xf32>
    %cst_17 = arith.constant 1.000000e+00 : f32
    %26 = vector.broadcast %cst_17 : f32 to vector<8x128xf32>
    %27 = arith.addf %26, %25 : vector<8x128xf32>
    %28 = arith.divf %26, %27 : vector<8x128xf32>
    %29 = vector.extract_strided_slice %16 {offsets = [0, 256], sizes = [8, 128], strides = [1, 1]} : vector<8x512xf32> to vector<8x128xf32>
    %30 = math.tanh %29 : vector<8x128xf32>
    %31 = vector.extract_strided_slice %16 {offsets = [0, 384], sizes = [8, 128], strides = [1, 1]} : vector<8x512xf32> to vector<8x128xf32>
    %32 = arith.negf %31 : vector<8x128xf32>
    %33 = math.exp %32 : vector<8x128xf32>
    %cst_18 = arith.constant 1.000000e+00 : f32
    %34 = vector.broadcast %cst_18 : f32 to vector<8x128xf32>
    %35 = arith.addf %34, %33 : vector<8x128xf32>
    %36 = arith.divf %34, %35 : vector<8x128xf32>
    %37 = arith.mulf %28, %11 : vector<8x128xf32>
    %38 = arith.mulf %22, %30 : vector<8x128xf32>
    %39 = arith.addf %37, %38 : vector<8x128xf32>
    %40 = math.tanh %39 : vector<8x128xf32>
    %41 = arith.mulf %36, %40 : vector<8x128xf32>
    %42 = arith.index_cast %c0_i32 : i32 to index
    %c0_19 = arith.constant 0 : index
    %c0_20 = arith.constant 0 : index
    %43 = vector.load %arg9[%42, %c0_19, %c0_20] : memref<8x8x128xf32, #tpu.memory_space<vmem>>, vector<1x8x128xf32>
    %44 = vector.shape_cast %43 : vector<1x8x128xf32> to vector<8x128xf32>
    %45 = vector.shape_cast %41 : vector<8x128xf32> to vector<1x8x128xf32>
    tpu.vector_store %arg9[%42, %c0_19, %c0_20], %45 {strides = array<i32>} : memref<8x8x128xf32, #tpu.memory_space<vmem>>, vector<1x8x128xf32>,
    %c1_i32 = arith.constant 1 : i32
    %46 = arith.index_cast %c1_i32 : i32 to index
    %c0_21 = arith.constant 0 : index
    %c0_22 = arith.constant 0 : index
    %47 = vector.load %arg8[%46, %c0_21, %c0_22] : memref<8x8x512xf32, #tpu.memory_space<vmem>>, vector<1x8x512xf32>
    %48 = vector.shape_cast %47 : vector<1x8x512xf32> to vector<8x512xf32>
    %cst_23 = arith.constant dense<0.000000e+00> : vector<8x512xf32>
    %49 = tpu.matmul %41, %9, %cst_23 {dimension_numbers = #tpu.dot_dimension_numbers<[1], [0], [0], [1], [0, 0, 1, 1], [], []>} : vector<8x128xf32>, vector<128x512xf32>, vector<8x512xf32> -> vector<8x512xf32>
    %50 = arith.addf %48, %49 : vector<8x512xf32>
    %51 = vector.extract_strided_slice %50 {offsets = [0, 0], sizes = [8, 128], strides = [1, 1]} : vector<8x512xf32> to vector<8x128xf32>
    %52 = arith.negf %51 : vector<8x128xf32>
    %53 = math.exp %52 : vector<8x128xf32>
    %cst_24 = arith.constant 1.000000e+00 : f32
    %54 = vector.broadcast %cst_24 : f32 to vector<8x128xf32>
    %55 = arith.addf %54, %53 : vector<8x128xf32>
    %56 = arith.divf %54, %55 : vector<8x128xf32>
    %57 = vector.extract_strided_slice %50 {offsets = [0, 128], sizes = [8, 128], strides = [1, 1]} : vector<8x512xf32> to vector<8x128xf32>
    %58 = arith.negf %57 : vector<8x128xf32>
    %59 = math.exp %58 : vector<8x128xf32>
    %cst_25 = arith.constant 1.000000e+00 : f32
    %60 = vector.broadcast %cst_25 : f32 to vector<8x128xf32>
    %61 = arith.addf %60, %59 : vector<8x128xf32>
    %62 = arith.divf %60, %61 : vector<8x128xf32>
    %63 = vector.extract_strided_slice %50 {offsets = [0, 256], sizes = [8, 128], strides = [1, 1]} : vector<8x512xf32> to vector<8x128xf32>
    %64 = math.tanh %63 : vector<8x128xf32>
    %65 = vector.extract_strided_slice %50 {offsets = [0, 384], sizes = [8, 128], strides = [1, 1]} : vector<8x512xf32> to vector<8x128xf32>
    %66 = arith.negf %65 : vector<8x128xf32>
    %67 = math.exp %66 : vector<8x128xf32>
    %cst_26 = arith.constant 1.000000e+00 : f32
    %68 = vector.broadcast %cst_26 : f32 to vector<8x128xf32>
    %69 = arith.addf %68, %67 : vector<8x128xf32>
    %70 = arith.divf %68, %69 : vector<8x128xf32>
    %71 = arith.mulf %62, %39 : vector<8x128xf32>
    %72 = arith.mulf %56, %64 : vector<8x128xf32>
    %73 = arith.addf %71, %72 : vector<8x128xf32>
    %74 = math.tanh %73 : vector<8x128xf32>
    %75 = arith.mulf %70, %74 : vector<8x128xf32>
    %76 = arith.index_cast %c1_i32 : i32 to index
    %c0_27 = arith.constant 0 : index
    %c0_28 = arith.constant 0 : index
    %77 = vector.load %arg9[%76, %c0_27, %c0_28] : memref<8x8x128xf32, #tpu.memory_space<vmem>>, vector<1x8x128xf32>
    %78 = vector.shape_cast %77 : vector<1x8x128xf32> to vector<8x128xf32>
    %79 = vector.shape_cast %75 : vector<8x128xf32> to vector<1x8x128xf32>
    tpu.vector_store %arg9[%76, %c0_27, %c0_28], %79 {strides = array<i32>} : memref<8x8x128xf32, #tpu.memory_space<vmem>>, vector<1x8x128xf32>,
    %c2_i32 = arith.constant 2 : i32
    %80 = arith.index_cast %c2_i32 : i32 to index
    %c0_29 = arith.constant 0 : index
    %c0_30 = arith.constant 0 : index
    %81 = vector.load %arg8[%80, %c0_29, %c0_30] : memref<8x8x512xf32, #tpu.memory_space<vmem>>, vector<1x8x512xf32>
    %82 = vector.shape_cast %81 : vector<1x8x512xf32> to vector<8x512xf32>
    %cst_31 = arith.constant dense<0.000000e+00> : vector<8x512xf32>
    %83 = tpu.matmul %75, %9, %cst_31 {dimension_numbers = #tpu.dot_dimension_numbers<[1], [0], [0], [1], [0, 0, 1, 1], [], []>} : vector<8x128xf32>, vector<128x512xf32>, vector<8x512xf32> -> vector<8x512xf32>
    %84 = arith.addf %82, %83 : vector<8x512xf32>
    %85 = vector.extract_strided_slice %84 {offsets = [0, 0], sizes = [8, 128], strides = [1, 1]} : vector<8x512xf32> to vector<8x128xf32>
    %86 = arith.negf %85 : vector<8x128xf32>
    %87 = math.exp %86 : vector<8x128xf32>
    %cst_32 = arith.constant 1.000000e+00 : f32
    %88 = vector.broadcast %cst_32 : f32 to vector<8x128xf32>
    %89 = arith.addf %88, %87 : vector<8x128xf32>
    %90 = arith.divf %88, %89 : vector<8x128xf32>
    %91 = vector.extract_strided_slice %84 {offsets = [0, 128], sizes = [8, 128], strides = [1, 1]} : vector<8x512xf32> to vector<8x128xf32>
    %92 = arith.negf %91 : vector<8x128xf32>
    %93 = math.exp %92 : vector<8x128xf32>
    %cst_33 = arith.constant 1.000000e+00 : f32
    %94 = vector.broadcast %cst_33 : f32 to vector<8x128xf32>
    %95 = arith.addf %94, %93 : vector<8x128xf32>
    %96 = arith.divf %94, %95 : vector<8x128xf32>
    %97 = vector.extract_strided_slice %84 {offsets = [0, 256], sizes = [8, 128], strides = [1, 1]} : vector<8x512xf32> to vector<8x128xf32>
    %98 = math.tanh %97 : vector<8x128xf32>
    %99 = vector.extract_strided_slice %84 {offsets = [0, 384], sizes = [8, 128], strides = [1, 1]} : vector<8x512xf32> to vector<8x128xf32>
    %100 = arith.negf %99 : vector<8x128xf32>
    %101 = math.exp %100 : vector<8x128xf32>
    %cst_34 = arith.constant 1.000000e+00 : f32
    %102 = vector.broadcast %cst_34 : f32 to vector<8x128xf32>
    %103 = arith.addf %102, %101 : vector<8x128xf32>
    %104 = arith.divf %102, %103 : vector<8x128xf32>
    %105 = arith.mulf %96, %73 : vector<8x128xf32>
    %106 = arith.mulf %90, %98 : vector<8x128xf32>
    %107 = arith.addf %105, %106 : vector<8x128xf32>
    %108 = math.tanh %107 : vector<8x128xf32>
    %109 = arith.mulf %104, %108 : vector<8x128xf32>
    %110 = arith.index_cast %c2_i32 : i32 to index
    %c0_35 = arith.constant 0 : index
    %c0_36 = arith.constant 0 : index
    %111 = vector.load %arg9[%110, %c0_35, %c0_36] : memref<8x8x128xf32, #tpu.memory_space<vmem>>, vector<1x8x128xf32>
    %112 = vector.shape_cast %111 : vector<1x8x128xf32> to vector<8x128xf32>
    %113 = vector.shape_cast %109 : vector<8x128xf32> to vector<1x8x128xf32>
    tpu.vector_store %arg9[%110, %c0_35, %c0_36], %113 {strides = array<i32>} : memref<8x8x128xf32, #tpu.memory_space<vmem>>, vector<1x8x128xf32>,
    %c3_i32 = arith.constant 3 : i32
    %114 = arith.index_cast %c3_i32 : i32 to index
    %c0_37 = arith.constant 0 : index
    %c0_38 = arith.constant 0 : index
    %115 = vector.load %arg8[%114, %c0_37, %c0_38] : memref<8x8x512xf32, #tpu.memory_space<vmem>>, vector<1x8x512xf32>
    %116 = vector.shape_cast %115 : vector<1x8x512xf32> to vector<8x512xf32>
    %cst_39 = arith.constant dense<0.000000e+00> : vector<8x512xf32>
    %117 = tpu.matmul %109, %9, %cst_39 {dimension_numbers = #tpu.dot_dimension_numbers<[1], [0], [0], [1], [0, 0, 1, 1], [], []>} : vector<8x128xf32>, vector<128x512xf32>, vector<8x512xf32> -> vector<8x512xf32>
    %118 = arith.addf %116, %117 : vector<8x512xf32>
    %119 = vector.extract_strided_slice %118 {offsets = [0, 0], sizes = [8, 128], strides = [1, 1]} : vector<8x512xf32> to vector<8x128xf32>
    %120 = arith.negf %119 : vector<8x128xf32>
    %121 = math.exp %120 : vector<8x128xf32>
    %cst_40 = arith.constant 1.000000e+00 : f32
    %122 = vector.broadcast %cst_40 : f32 to vector<8x128xf32>
    %123 = arith.addf %122, %121 : vector<8x128xf32>
    %124 = arith.divf %122, %123 : vector<8x128xf32>
    %125 = vector.extract_strided_slice %118 {offsets = [0, 128], sizes = [8, 128], strides = [1, 1]} : vector<8x512xf32> to vector<8x128xf32>
    %126 = arith.negf %125 : vector<8x128xf32>
    %127 = math.exp %126 : vector<8x128xf32>
    %cst_41 = arith.constant 1.000000e+00 : f32
    %128 = vector.broadcast %cst_41 : f32 to vector<8x128xf32>
    %129 = arith.addf %128, %127 : vector<8x128xf32>
    %130 = arith.divf %128, %129 : vector<8x128xf32>
    %131 = vector.extract_strided_slice %118 {offsets = [0, 256], sizes = [8, 128], strides = [1, 1]} : vector<8x512xf32> to vector<8x128xf32>
    %132 = math.tanh %131 : vector<8x128xf32>
    %133 = vector.extract_strided_slice %118 {offsets = [0, 384], sizes = [8, 128], strides = [1, 1]} : vector<8x512xf32> to vector<8x128xf32>
    %134 = arith.negf %133 : vector<8x128xf32>
    %135 = math.exp %134 : vector<8x128xf32>
    %cst_42 = arith.constant 1.000000e+00 : f32
    %136 = vector.broadcast %cst_42 : f32 to vector<8x128xf32>
    %137 = arith.addf %136, %135 : vector<8x128xf32>
    %138 = arith.divf %136, %137 : vector<8x128xf32>
    %139 = arith.mulf %130, %107 : vector<8x128xf32>
    %140 = arith.mulf %124, %132 : vector<8x128xf32>
    %141 = arith.addf %139, %140 : vector<8x128xf32>
    %142 = math.tanh %141 : vector<8x128xf32>
    %143 = arith.mulf %138, %142 : vector<8x128xf32>
    %144 = arith.index_cast %c3_i32 : i32 to index
    %c0_43 = arith.constant 0 : index
    %c0_44 = arith.constant 0 : index
    %145 = vector.load %arg9[%144, %c0_43, %c0_44] : memref<8x8x128xf32, #tpu.memory_space<vmem>>, vector<1x8x128xf32>
    %146 = vector.shape_cast %145 : vector<1x8x128xf32> to vector<8x128xf32>
    %147 = vector.shape_cast %143 : vector<8x128xf32> to vector<1x8x128xf32>
    tpu.vector_store %arg9[%144, %c0_43, %c0_44], %147 {strides = array<i32>} : memref<8x8x128xf32, #tpu.memory_space<vmem>>, vector<1x8x128xf32>,
    %c4_i32 = arith.constant 4 : i32
    %148 = arith.index_cast %c4_i32 : i32 to index
    %c0_45 = arith.constant 0 : index
    %c0_46 = arith.constant 0 : index
    %149 = vector.load %arg8[%148, %c0_45, %c0_46] : memref<8x8x512xf32, #tpu.memory_space<vmem>>, vector<1x8x512xf32>
    %150 = vector.shape_cast %149 : vector<1x8x512xf32> to vector<8x512xf32>
    %cst_47 = arith.constant dense<0.000000e+00> : vector<8x512xf32>
    %151 = tpu.matmul %143, %9, %cst_47 {dimension_numbers = #tpu.dot_dimension_numbers<[1], [0], [0], [1], [0, 0, 1, 1], [], []>} : vector<8x128xf32>, vector<128x512xf32>, vector<8x512xf32> -> vector<8x512xf32>
    %152 = arith.addf %150, %151 : vector<8x512xf32>
    %153 = vector.extract_strided_slice %152 {offsets = [0, 0], sizes = [8, 128], strides = [1, 1]} : vector<8x512xf32> to vector<8x128xf32>
    %154 = arith.negf %153 : vector<8x128xf32>
    %155 = math.exp %154 : vector<8x128xf32>
    %cst_48 = arith.constant 1.000000e+00 : f32
    %156 = vector.broadcast %cst_48 : f32 to vector<8x128xf32>
    %157 = arith.addf %156, %155 : vector<8x128xf32>
    %158 = arith.divf %156, %157 : vector<8x128xf32>
    %159 = vector.extract_strided_slice %152 {offsets = [0, 128], sizes = [8, 128], strides = [1, 1]} : vector<8x512xf32> to vector<8x128xf32>
    %160 = arith.negf %159 : vector<8x128xf32>
    %161 = math.exp %160 : vector<8x128xf32>
    %cst_49 = arith.constant 1.000000e+00 : f32
    %162 = vector.broadcast %cst_49 : f32 to vector<8x128xf32>
    %163 = arith.addf %162, %161 : vector<8x128xf32>
    %164 = arith.divf %162, %163 : vector<8x128xf32>
    %165 = vector.extract_strided_slice %152 {offsets = [0, 256], sizes = [8, 128], strides = [1, 1]} : vector<8x512xf32> to vector<8x128xf32>
    %166 = math.tanh %165 : vector<8x128xf32>
    %167 = vector.extract_strided_slice %152 {offsets = [0, 384], sizes = [8, 128], strides = [1, 1]} : vector<8x512xf32> to vector<8x128xf32>
    %168 = arith.negf %167 : vector<8x128xf32>
    %169 = math.exp %168 : vector<8x128xf32>
    %cst_50 = arith.constant 1.000000e+00 : f32
    %170 = vector.broadcast %cst_50 : f32 to vector<8x128xf32>
    %171 = arith.addf %170, %169 : vector<8x128xf32>
    %172 = arith.divf %170, %171 : vector<8x128xf32>
    %173 = arith.mulf %164, %141 : vector<8x128xf32>
    %174 = arith.mulf %158, %166 : vector<8x128xf32>
    %175 = arith.addf %173, %174 : vector<8x128xf32>
    %176 = math.tanh %175 : vector<8x128xf32>
    %177 = arith.mulf %172, %176 : vector<8x128xf32>
    %178 = arith.index_cast %c4_i32 : i32 to index
    %c0_51 = arith.constant 0 : index
    %c0_52 = arith.constant 0 : index
    %179 = vector.load %arg9[%178, %c0_51, %c0_52] : memref<8x8x128xf32, #tpu.memory_space<vmem>>, vector<1x8x128xf32>
    %180 = vector.shape_cast %179 : vector<1x8x128xf32> to vector<8x128xf32>
    %181 = vector.shape_cast %177 : vector<8x128xf32> to vector<1x8x128xf32>
    tpu.vector_store %arg9[%178, %c0_51, %c0_52], %181 {strides = array<i32>} : memref<8x8x128xf32, #tpu.memory_space<vmem>>, vector<1x8x128xf32>,
    %c5_i32 = arith.constant 5 : i32
    %182 = arith.index_cast %c5_i32 : i32 to index
    %c0_53 = arith.constant 0 : index
    %c0_54 = arith.constant 0 : index
    %183 = vector.load %arg8[%182, %c0_53, %c0_54] : memref<8x8x512xf32, #tpu.memory_space<vmem>>, vector<1x8x512xf32>
    %184 = vector.shape_cast %183 : vector<1x8x512xf32> to vector<8x512xf32>
    %cst_55 = arith.constant dense<0.000000e+00> : vector<8x512xf32>
    %185 = tpu.matmul %177, %9, %cst_55 {dimension_numbers = #tpu.dot_dimension_numbers<[1], [0], [0], [1], [0, 0, 1, 1], [], []>} : vector<8x128xf32>, vector<128x512xf32>, vector<8x512xf32> -> vector<8x512xf32>
    %186 = arith.addf %184, %185 : vector<8x512xf32>
    %187 = vector.extract_strided_slice %186 {offsets = [0, 0], sizes = [8, 128], strides = [1, 1]} : vector<8x512xf32> to vector<8x128xf32>
    %188 = arith.negf %187 : vector<8x128xf32>
    %189 = math.exp %188 : vector<8x128xf32>
    %cst_56 = arith.constant 1.000000e+00 : f32
    %190 = vector.broadcast %cst_56 : f32 to vector<8x128xf32>
    %191 = arith.addf %190, %189 : vector<8x128xf32>
    %192 = arith.divf %190, %191 : vector<8x128xf32>
    %193 = vector.extract_strided_slice %186 {offsets = [0, 128], sizes = [8, 128], strides = [1, 1]} : vector<8x512xf32> to vector<8x128xf32>
    %194 = arith.negf %193 : vector<8x128xf32>
    %195 = math.exp %194 : vector<8x128xf32>
    %cst_57 = arith.constant 1.000000e+00 : f32
    %196 = vector.broadcast %cst_57 : f32 to vector<8x128xf32>
    %197 = arith.addf %196, %195 : vector<8x128xf32>
    %198 = arith.divf %196, %197 : vector<8x128xf32>
    %199 = vector.extract_strided_slice %186 {offsets = [0, 256], sizes = [8, 128], strides = [1, 1]} : vector<8x512xf32> to vector<8x128xf32>
    %200 = math.tanh %199 : vector<8x128xf32>
    %201 = vector.extract_strided_slice %186 {offsets = [0, 384], sizes = [8, 128], strides = [1, 1]} : vector<8x512xf32> to vector<8x128xf32>
    %202 = arith.negf %201 : vector<8x128xf32>
    %203 = math.exp %202 : vector<8x128xf32>
    %cst_58 = arith.constant 1.000000e+00 : f32
    %204 = vector.broadcast %cst_58 : f32 to vector<8x128xf32>
    %205 = arith.addf %204, %203 : vector<8x128xf32>
    %206 = arith.divf %204, %205 : vector<8x128xf32>
    %207 = arith.mulf %198, %175 : vector<8x128xf32>
    %208 = arith.mulf %192, %200 : vector<8x128xf32>
    %209 = arith.addf %207, %208 : vector<8x128xf32>
    %210 = math.tanh %209 : vector<8x128xf32>
    %211 = arith.mulf %206, %210 : vector<8x128xf32>
    %212 = arith.index_cast %c5_i32 : i32 to index
    %c0_59 = arith.constant 0 : index
    %c0_60 = arith.constant 0 : index
    %213 = vector.load %arg9[%212, %c0_59, %c0_60] : memref<8x8x128xf32, #tpu.memory_space<vmem>>, vector<1x8x128xf32>
    %214 = vector.shape_cast %213 : vector<1x8x128xf32> to vector<8x128xf32>
    %215 = vector.shape_cast %211 : vector<8x128xf32> to vector<1x8x128xf32>
    tpu.vector_store %arg9[%212, %c0_59, %c0_60], %215 {strides = array<i32>} : memref<8x8x128xf32, #tpu.memory_space<vmem>>, vector<1x8x128xf32>,
    %c6_i32 = arith.constant 6 : i32
    %216 = arith.index_cast %c6_i32 : i32 to index
    %c0_61 = arith.constant 0 : index
    %c0_62 = arith.constant 0 : index
    %217 = vector.load %arg8[%216, %c0_61, %c0_62] : memref<8x8x512xf32, #tpu.memory_space<vmem>>, vector<1x8x512xf32>
    %218 = vector.shape_cast %217 : vector<1x8x512xf32> to vector<8x512xf32>
    %cst_63 = arith.constant dense<0.000000e+00> : vector<8x512xf32>
    %219 = tpu.matmul %211, %9, %cst_63 {dimension_numbers = #tpu.dot_dimension_numbers<[1], [0], [0], [1], [0, 0, 1, 1], [], []>} : vector<8x128xf32>, vector<128x512xf32>, vector<8x512xf32> -> vector<8x512xf32>
    %220 = arith.addf %218, %219 : vector<8x512xf32>
    %221 = vector.extract_strided_slice %220 {offsets = [0, 0], sizes = [8, 128], strides = [1, 1]} : vector<8x512xf32> to vector<8x128xf32>
    %222 = arith.negf %221 : vector<8x128xf32>
    %223 = math.exp %222 : vector<8x128xf32>
    %cst_64 = arith.constant 1.000000e+00 : f32
    %224 = vector.broadcast %cst_64 : f32 to vector<8x128xf32>
    %225 = arith.addf %224, %223 : vector<8x128xf32>
    %226 = arith.divf %224, %225 : vector<8x128xf32>
    %227 = vector.extract_strided_slice %220 {offsets = [0, 128], sizes = [8, 128], strides = [1, 1]} : vector<8x512xf32> to vector<8x128xf32>
    %228 = arith.negf %227 : vector<8x128xf32>
    %229 = math.exp %228 : vector<8x128xf32>
    %cst_65 = arith.constant 1.000000e+00 : f32
    %230 = vector.broadcast %cst_65 : f32 to vector<8x128xf32>
    %231 = arith.addf %230, %229 : vector<8x128xf32>
    %232 = arith.divf %230, %231 : vector<8x128xf32>
    %233 = vector.extract_strided_slice %220 {offsets = [0, 256], sizes = [8, 128], strides = [1, 1]} : vector<8x512xf32> to vector<8x128xf32>
    %234 = math.tanh %233 : vector<8x128xf32>
    %235 = vector.extract_strided_slice %220 {offsets = [0, 384], sizes = [8, 128], strides = [1, 1]} : vector<8x512xf32> to vector<8x128xf32>
    %236 = arith.negf %235 : vector<8x128xf32>
    %237 = math.exp %236 : vector<8x128xf32>
    %cst_66 = arith.constant 1.000000e+00 : f32
    %238 = vector.broadcast %cst_66 : f32 to vector<8x128xf32>
    %239 = arith.addf %238, %237 : vector<8x128xf32>
    %240 = arith.divf %238, %239 : vector<8x128xf32>
    %241 = arith.mulf %232, %209 : vector<8x128xf32>
    %242 = arith.mulf %226, %234 : vector<8x128xf32>
    %243 = arith.addf %241, %242 : vector<8x128xf32>
    %244 = math.tanh %243 : vector<8x128xf32>
    %245 = arith.mulf %240, %244 : vector<8x128xf32>
    %246 = arith.index_cast %c6_i32 : i32 to index
    %c0_67 = arith.constant 0 : index
    %c0_68 = arith.constant 0 : index
    %247 = vector.load %arg9[%246, %c0_67, %c0_68] : memref<8x8x128xf32, #tpu.memory_space<vmem>>, vector<1x8x128xf32>
    %248 = vector.shape_cast %247 : vector<1x8x128xf32> to vector<8x128xf32>
    %249 = vector.shape_cast %245 : vector<8x128xf32> to vector<1x8x128xf32>
    tpu.vector_store %arg9[%246, %c0_67, %c0_68], %249 {strides = array<i32>} : memref<8x8x128xf32, #tpu.memory_space<vmem>>, vector<1x8x128xf32>,
    %c7_i32 = arith.constant 7 : i32
    %250 = arith.index_cast %c7_i32 : i32 to index
    %c0_69 = arith.constant 0 : index
    %c0_70 = arith.constant 0 : index
    %251 = vector.load %arg8[%250, %c0_69, %c0_70] : memref<8x8x512xf32, #tpu.memory_space<vmem>>, vector<1x8x512xf32>
    %252 = vector.shape_cast %251 : vector<1x8x512xf32> to vector<8x512xf32>
    %cst_71 = arith.constant dense<0.000000e+00> : vector<8x512xf32>
    %253 = tpu.matmul %245, %9, %cst_71 {dimension_numbers = #tpu.dot_dimension_numbers<[1], [0], [0], [1], [0, 0, 1, 1], [], []>} : vector<8x128xf32>, vector<128x512xf32>, vector<8x512xf32> -> vector<8x512xf32>
    %254 = arith.addf %252, %253 : vector<8x512xf32>
    %255 = vector.extract_strided_slice %254 {offsets = [0, 0], sizes = [8, 128], strides = [1, 1]} : vector<8x512xf32> to vector<8x128xf32>
    %256 = arith.negf %255 : vector<8x128xf32>
    %257 = math.exp %256 : vector<8x128xf32>
    %cst_72 = arith.constant 1.000000e+00 : f32
    %258 = vector.broadcast %cst_72 : f32 to vector<8x128xf32>
    %259 = arith.addf %258, %257 : vector<8x128xf32>
    %260 = arith.divf %258, %259 : vector<8x128xf32>
    %261 = vector.extract_strided_slice %254 {offsets = [0, 128], sizes = [8, 128], strides = [1, 1]} : vector<8x512xf32> to vector<8x128xf32>
    %262 = arith.negf %261 : vector<8x128xf32>
    %263 = math.exp %262 : vector<8x128xf32>
    %cst_73 = arith.constant 1.000000e+00 : f32
    %264 = vector.broadcast %cst_73 : f32 to vector<8x128xf32>
    %265 = arith.addf %264, %263 : vector<8x128xf32>
    %266 = arith.divf %264, %265 : vector<8x128xf32>
    %267 = vector.extract_strided_slice %254 {offsets = [0, 256], sizes = [8, 128], strides = [1, 1]} : vector<8x512xf32> to vector<8x128xf32>
    %268 = math.tanh %267 : vector<8x128xf32>
    %269 = vector.extract_strided_slice %254 {offsets = [0, 384], sizes = [8, 128], strides = [1, 1]} : vector<8x512xf32> to vector<8x128xf32>
    %270 = arith.negf %269 : vector<8x128xf32>
    %271 = math.exp %270 : vector<8x128xf32>
    %cst_74 = arith.constant 1.000000e+00 : f32
    %272 = vector.broadcast %cst_74 : f32 to vector<8x128xf32>
    %273 = arith.addf %272, %271 : vector<8x128xf32>
    %274 = arith.divf %272, %273 : vector<8x128xf32>
    %275 = arith.mulf %266, %243 : vector<8x128xf32>
    %276 = arith.mulf %260, %268 : vector<8x128xf32>
    %277 = arith.addf %275, %276 : vector<8x128xf32>
    %278 = math.tanh %277 : vector<8x128xf32>
    %279 = arith.mulf %274, %278 : vector<8x128xf32>
    %280 = arith.index_cast %c7_i32 : i32 to index
    %c0_75 = arith.constant 0 : index
    %c0_76 = arith.constant 0 : index
    %281 = vector.load %arg9[%280, %c0_75, %c0_76] : memref<8x8x128xf32, #tpu.memory_space<vmem>>, vector<1x8x128xf32>
    %282 = vector.shape_cast %281 : vector<1x8x128xf32> to vector<8x128xf32>
    %283 = vector.shape_cast %279 : vector<8x128xf32> to vector<1x8x128xf32>
    tpu.vector_store %arg9[%280, %c0_75, %c0_76], %283 {strides = array<i32>} : memref<8x8x128xf32, #tpu.memory_space<vmem>>, vector<1x8x128xf32>,
    %c8_i32 = arith.constant 8 : i32
    %c0_77 = arith.constant 0 : index
    %c0_78 = arith.constant 0 : index
    %c0_79 = arith.constant 0 : index
    %284 = vector.load %arg9[%c0_77, %c0_78, %c0_79] : memref<8x8x128xf32, #tpu.memory_space<vmem>>, vector<8x8x128xf32>
    %285 = vector.shape_cast %284 : vector<8x8x128xf32> to vector<64x128xf32>
    %c0_80 = arith.constant 0 : index
    %c0_81 = arith.constant 0 : index
    %286 = vector.load %arg5[%c0_80, %c0_81] : memref<128x128xf32, #tpu.memory_space<vmem>>, vector<128x128xf32>
    %cst_82 = arith.constant dense<0.000000e+00> : vector<64x128xf32>
    %287 = tpu.matmul %285, %286, %cst_82 {dimension_numbers = #tpu.dot_dimension_numbers<[1], [0], [0], [1], [0, 0, 1, 1], [], []>} : vector<64x128xf32>, vector<128x128xf32>, vector<64x128xf32> -> vector<64x128xf32>
    %c0_83 = arith.constant 0 : index
    %c0_84 = arith.constant 0 : index
    %288 = vector.load %arg6[%c0_83, %c0_84] : memref<1x128xf32, #tpu.memory_space<vmem>>, vector<1x128xf32>
    %289 = vector.broadcast %288 : vector<1x128xf32> to vector<64x128xf32>
    %290 = arith.addf %287, %289 : vector<64x128xf32>
    %cst_85 = arith.constant 0.000000e+00 : f32
    %291 = vector.broadcast %cst_85 : f32 to vector<64x128xf32>
    %292 = arith.maximumf %290, %291 : vector<64x128xf32>
    %293 = vector.shape_cast %292 : vector<64x128xf32> to vector<8x8x128xf32>
    %c0_86 = arith.constant 0 : index
    %c0_87 = arith.constant 0 : index
    %c0_88 = arith.constant 0 : index
    %294 = vector.load %arg7[%c0_86, %c0_87, %c0_88] : memref<8x8x128xf32, #tpu.memory_space<vmem>>, vector<8x8x128xf32>
    tpu.vector_store %arg7[%c0_86, %c0_87, %c0_88], %293 {strides = array<i32>} : memref<8x8x128xf32, #tpu.memory_space<vmem>>, vector<8x8x128xf32>,
    return
  }
  func.func @transform_0(%arg0: i32) -> (i32, i32, i32) {
    %c0_i32 = arith.constant 0 : i32
    %c0_i32_0 = arith.constant 0 : i32
    %c0_i32_1 = arith.constant 0 : i32
    %c0_i32_2 = arith.constant 0 : i32
    return %c0_i32, %c0_i32_0, %c0_i32_1 : i32, i32, i32
  }
  func.func @transform_1(%arg0: i32) -> (i32, i32) {
    %c0_i32 = arith.constant 0 : i32
    %c0_i32_0 = arith.constant 0 : i32
    %c0_i32_1 = arith.constant 0 : i32
    return %c0_i32, %c0_i32_0 : i32, i32
  }
  func.func @transform_2(%arg0: i32) -> (i32, i32) {
    %c0_i32 = arith.constant 0 : i32
    %c0_i32_0 = arith.constant 0 : i32
    %c0_i32_1 = arith.constant 0 : i32
    return %c0_i32, %c0_i32_0 : i32, i32
  }
  func.func @transform_3(%arg0: i32) -> (i32, i32) {
    %c0_i32 = arith.constant 0 : i32
    %c0_i32_0 = arith.constant 0 : i32
    %c0_i32_1 = arith.constant 0 : i32
    return %c0_i32, %c0_i32_0 : i32, i32
  }
  func.func @transform_4(%arg0: i32) -> (i32, i32) {
    %c0_i32 = arith.constant 0 : i32
    %c0_i32_0 = arith.constant 0 : i32
    %c0_i32_1 = arith.constant 0 : i32
    return %c0_i32, %c0_i32_0 : i32, i32
  }
  func.func @transform_5(%arg0: i32) -> (i32, i32) {
    %c0_i32 = arith.constant 0 : i32
    %c0_i32_0 = arith.constant 0 : i32
    %c0_i32_1 = arith.constant 0 : i32
    return %c0_i32, %c0_i32_0 : i32, i32
  }
  func.func @transform_6(%arg0: i32) -> (i32, i32, i32) {
    %c0_i32 = arith.constant 0 : i32
    %c0_i32_0 = arith.constant 0 : i32
    %c0_i32_1 = arith.constant 0 : i32
    %c0_i32_2 = arith.constant 0 : i32
    return %c0_i32, %c0_i32_0, %c0_i32_1 : i32, i32, i32
  }
}

</mosaic_0001>

<llo_original>
// kernel: tpu_custom_call.1
$region0: #{tpu_custom_call.1}
  #allocation0 [shape = 'u32[]', space=smem, size = 0x4, offset = 0x4, fixed_abs, tag = 'smem constant byte address 0x4 - core index']
  #allocation1 [shape = 'u32[72,128]{1,0:T(1,128)}', space=vmem, size = 0x9000, scoped, tag = 'internal scratch']
  #allocation2 [shape = 'f32[8,8,512]{2,1,0:T(8,128)}', space=vmem, size = 0x20000, scoped, tag = 'scratch operand']
  #allocation3 [shape = 'f32[8,8,128]{2,1,0:T(8,128)}', space=vmem, size = 0x8000, scoped, tag = 'scratch operand']
  %s0 = inlined_call_operand.hbm [shape: f32[8,8,128], index: 0, kind: input, shape index: {}]
  %s1 = inlined_call_operand.hbm [shape: f32[128,512], index: 1, kind: input, shape index: {}]
  %s2 = inlined_call_operand.hbm [shape: f32[128,512], index: 2, kind: input, shape index: {}]
  %s3 = inlined_call_operand.hbm [shape: f32[1,512], index: 3, kind: input, shape index: {}]
  %s4 = inlined_call_operand.hbm [shape: f32[128,128], index: 4, kind: input, shape index: {}]
  %s5 = inlined_call_operand.vmem [shape: f32[1,128], index: 5, kind: input, shape index: {}]
  %s6 = inlined_call_operand.hbm [shape: f32[8,8,128], index: 6, kind: output, shape index: {}]
  %s7 = sld [smem:[#allocation0]]
  $region54: #{tpu_custom_call.1} parent=0
    _
  %s9 = ssub.s32 1, %s7
  %s10 = scalar_select 0, %s9, %s7
  $region1: #{tpu_custom_call.1} parent=0
    #allocation4 [shape = 'u8[32768]{0}', space=vmem, size = 0x8000, scoped, tag = 'input window, operand 0, single buffered']
    #allocation5 [shape = 's32[1]{0}', space=sflag, size = 0x4, scoped, tag = 'scoped memory for tpu_custom_call.1']
    #allocation6 [shape = 's32[1]{0}', space=sflag, size = 0x4, scoped, tag = 'scoped memory for tpu_custom_call.1']
    #allocation7 [shape = 'u8[262144]{0}', space=vmem, size = 0x40000, scoped, tag = 'input window, operand 1, single buffered']
    #allocation8 [shape = 's32[1]{0}', space=sflag, size = 0x4, scoped, tag = 'scoped memory for tpu_custom_call.1']
    #allocation9 [shape = 'u8[262144]{0}', space=vmem, size = 0x40000, scoped, tag = 'input window, operand 2, single buffered']
    #allocation10 [shape = 'u8[2048]{0}', space=vmem, size = 0x800, scoped, tag = 'input window, operand 3, single buffered']
    #allocation11 [shape = 's32[1]{0}', space=sflag, size = 0x4, scoped, tag = 'scoped memory for tpu_custom_call.1']
    #allocation12 [shape = 'u8[65536]{0}', space=vmem, size = 0x10000, scoped, tag = 'input window, operand 4, single buffered']
    #allocation13 [shape = 'u8[32768]{0}', space=vmem, size = 0x8000, scoped, tag = 'output window, operand 0, single buffered']
    %11 = vsyncpa [#allocation5], 0
    %12 = vsyncpa [#allocation8], 0
    %13 = vsyncpa [#allocation11], 0
    %14 = vsyncpa [#allocation6], 0
    // Predicated region
    $region2: #{tpu_custom_call.1} parent=1 // pred_check
      _
    $region3: #{tpu_custom_call.1} parent=1 // pred_check_branch
      %16 = sbr.rel (0) target = $region5
    $region4: #{tpu_custom_call.1} parent=1 // pred_region
      %18 = vsyncadd [#allocation5], 0
      %s19 = sshll.u32 %s0, 4
      %s20 = int_to_ptr.hbm [resolvable:$true] %s19
      %s21 = sshll.u32 [#allocation4], 4
      %s22 = int_to_ptr.vmem [resolvable:$true] %s21
      %27 = dma.hbm_to_vmem [thread:$0]  %s20, 1024, %s22, [#allocation5], 128, 128, 8
    $region5: #{tpu_custom_call.1} parent=1 // pred_fallthru
      _
    // Predicated region
    $region6: #{tpu_custom_call.1} parent=1 // pred_check
      _
    $region7: #{tpu_custom_call.1} parent=1 // pred_check_branch
      %29 = sbr.rel (0) target = $region9
    $region8: #{tpu_custom_call.1} parent=1 // pred_region
      %31 = vsyncadd [#allocation8], 0
      %s32 = sshll.u32 %s1, 4
      %s33 = int_to_ptr.hbm [resolvable:$true] %s32
      %s34 = sshll.u32 [#allocation7], 4
      %s35 = int_to_ptr.vmem [resolvable:$true] %s34
      %40 = dma.hbm_to_vmem [thread:$0]  %s33, 8192, %s35, [#allocation8], 512, 512, 32
    $region9: #{tpu_custom_call.1} parent=1 // pred_fallthru
      _
    // Predicated region
    $region10: #{tpu_custom_call.1} parent=1 // pred_check
      _
    $region11: #{tpu_custom_call.1} parent=1 // pred_check_branch
      %42 = sbr.rel (0) target = $region13
    $region12: #{tpu_custom_call.1} parent=1 // pred_region
      %44 = vsyncadd [#allocation8], 0
      %s45 = sshll.u32 %s2, 4
      %s46 = int_to_ptr.hbm [resolvable:$true] %s45
      %s47 = sshll.u32 [#allocation9], 4
      %s48 = int_to_ptr.vmem [resolvable:$true] %s47
      %53 = dma.hbm_to_vmem [thread:$0]  %s46, 8192, %s48, [#allocation8], 512, 512, 32
    $region13: #{tpu_custom_call.1} parent=1 // pred_fallthru
      _
    // Predicated region
    $region14: #{tpu_custom_call.1} parent=1 // pred_check
      _
    $region15: #{tpu_custom_call.1} parent=1 // pred_check_branch
      %55 = sbr.rel (0) target = $region17
    $region16: #{tpu_custom_call.1} parent=1 // pred_region
      %57 = vsyncadd [#allocation11], 0
      %s59 = sshll.u32 %s3, 4
      %s60 = int_to_ptr.hbm [resolvable:$true] %s59
      %s61 = sshll.u32 [#allocation10], 4
      %s62 = int_to_ptr.vmem [resolvable:$true] %s61
      %64 = dma.hbm_to_vmem [thread:$0]  %s60, 64, %s62, [#allocation11]
    $region17: #{tpu_custom_call.1} parent=1 // pred_fallthru
      _
    // Predicated region
    $region18: #{tpu_custom_call.1} parent=1 // pred_check
      _
    $region19: #{tpu_custom_call.1} parent=1 // pred_check_branch
      %66 = sbr.rel (0) target = $region21
    $region20: #{tpu_custom_call.1} parent=1 // pred_region
      %68 = vsyncadd [#allocation11], 0
      %s69 = sshll.u32 %s4, 4
      %s70 = int_to_ptr.hbm [resolvable:$true] %s69
      %s71 = sshll.u32 [#allocation12], 4
      %s72 = int_to_ptr.vmem [resolvable:$true] %s71
      %77 = dma.hbm_to_vmem [thread:$0]  %s70, 2048, %s72, [#allocation11], 128, 128, 8
    $region21: #{tpu_custom_call.1} parent=1 // pred_fallthru
      _
    // Predicated region
    $region22: #{tpu_custom_call.1} parent=1 // pred_check
      _
    $region23: #{tpu_custom_call.1} parent=1 // pred_check_branch
      %79 = sbr.rel (0) target = $region25
    $region24: #{tpu_custom_call.1} parent=1 // pred_region
      _
    $region25: #{tpu_custom_call.1} parent=1 // pred_fallthru
      _
    // Predicated region
    $region26: #{tpu_custom_call.1} parent=1 // pred_check
      _
    $region27: #{tpu_custom_call.1} parent=1 // pred_check_branch
      %81 = sbr.rel (0) target = $region29
    $region28: #{tpu_custom_call.1} parent=1 // pred_region
      %83 = dma.done [#allocation5], 1024
    $region29: #{tpu_custom_call.1} parent=1 // pred_fallthru
      _
    // Predicated region
    $region30: #{tpu_custom_call.1} parent=1 // pred_check
      _
    $region31: #{tpu_custom_call.1} parent=1 // pred_check_branch
      %85 = sbr.rel (0) target = $region33
    $region32: #{tpu_custom_call.1} parent=1 // pred_region
      %87 = dma.done [#allocation8], 8192
    $region33: #{tpu_custom_call.1} parent=1 // pred_fallthru
      _
    // Predicated region
    $region34: #{tpu_custom_call.1} parent=1 // pred_check
      _
    $region35: #{tpu_custom_call.1} parent=1 // pred_check_branch
      %89 = sbr.rel (0) target = $region37
    $region36: #{tpu_custom_call.1} parent=1 // pred_region
      %91 = dma.done [#allocation8], 8192
    $region37: #{tpu_custom_call.1} parent=1 // pred_fallthru
      _
    // Predicated region
    $region38: #{tpu_custom_call.1} parent=1 // pred_check
      _
    $region39: #{tpu_custom_call.1} parent=1 // pred_check_branch
      %93 = sbr.rel (0) target = $region41
    $region40: #{tpu_custom_call.1} parent=1 // pred_region
      %95 = dma.done [#allocation11], 64
    $region41: #{tpu_custom_call.1} parent=1 // pred_fallthru
      _
    // Predicated region
    $region42: #{tpu_custom_call.1} parent=1 // pred_check
      _
    $region43: #{tpu_custom_call.1} parent=1 // pred_check_branch
      %97 = sbr.rel (0) target = $region45
    $region44: #{tpu_custom_call.1} parent=1 // pred_region
      %99 = dma.done [#allocation11], 2048
    $region45: #{tpu_custom_call.1} parent=1 // pred_fallthru
      _
    %v100 = vld [vmem:[#allocation4] sm:$0xff]
    %v101 = vld [vmem:[#allocation4 + $0x8] sm:$0xff]
    %v102 = vld [vmem:[#allocation4 + $0x10] sm:$0xff]
    %v103 = vld [vmem:[#allocation4 + $0x18] sm:$0xff]
    %v104 = vld [vmem:[#allocation4 + $0x20] sm:$0xff]
    %v105 = vld [vmem:[#allocation4 + $0x28] sm:$0xff]
    %v106 = vld [vmem:[#allocation4 + $0x30] sm:$0xff]
    %v107 = vld [vmem:[#allocation4 + $0x38] sm:$0xff]
    %v108 = vld [vmem:[#allocation7] sm:$0xff]
    %v109 = vld [vmem:[#allocation7 + $0x8] sm:$0xff]
    %v110 = vld [vmem:[#allocation7 + $0x10] sm:$0xff]
    %v111 = vld [vmem:[#allocation7 + $0x18] sm:$0xff]
    %v112 = vld [vmem:[#allocation7 + $0x20] sm:$0xff]
    %v113 = vld [vmem:[#allocation7 + $0x28] sm:$0xff]
    %v114 = vld [vmem:[#allocation7 + $0x30] sm:$0xff]
    %v115 = vld [vmem:[#allocation7 + $0x38] sm:$0xff]
    %v116 = vld [vmem:[#allocation7 + $0x40] sm:$0xff]
    %v117 = vld [vmem:[#allocation7 + $0x48] sm:$0xff]
    %v118 = vld [vmem:[#allocation7 + $0x50] sm:$0xff]
    %v119 = vld [vmem:[#allocation7 + $0x58] sm:$0xff]
    %v120 = vld [vmem:[#allocation7 + $0x60] sm:$0xff]
    %v121 = vld [vmem:[#allocation7 + $0x68] sm:$0xff]
    %v122 = vld [vmem:[#allocation7 + $0x70] sm:$0xff]
    %v123 = vld [vmem:[#allocation7 + $0x78] sm:$0xff]
    %v124 = vld [vmem:[#allocation7 + $0x80] sm:$0xff]
    %v125 = vld [vmem:[#allocation7 + $0x88] sm:$0xff]
    %v126 = vld [vmem:[#allocation7 + $0x90] sm:$0xff]
    %v127 = vld [vmem:[#allocation7 + $0x98] sm:$0xff]
    %v128 = vld [vmem:[#allocation7 + $0xa0] sm:$0xff]
    %v129 = vld [vmem:[#allocation7 + $0xa8] sm:$0xff]
    %v130 = vld [vmem:[#allocation7 + $0xb0] sm:$0xff]
    %v131 = vld [vmem:[#allocation7 + $0xb8] sm:$0xff]
    %v132 = vld [vmem:[#allocation7 + $0xc0] sm:$0xff]
    %v133 = vld [vmem:[#allocation7 + $0xc8] sm:$0xff]
    %v134 = vld [vmem:[#allocation7 + $0xd0] sm:$0xff]
    %v135 = vld [vmem:[#allocation7 + $0xd8] sm:$0xff]
    %v136 = vld [vmem:[#allocation7 + $0xe0] sm:$0xff]
    %v137 = vld [vmem:[#allocation7 + $0xe8] sm:$0xff]
    %v138 = vld [vmem:[#allocation7 + $0xf0] sm:$0xff]
    %v139 = vld [vmem:[#allocation7 + $0xf8] sm:$0xff]
    %v140 = vld [vmem:[#allocation7 + $0x100] sm:$0xff]
    %v141 = vld [vmem:[#allocation7 + $0x108] sm:$0xff]
    %v142 = vld [vmem:[#allocation7 + $0x110] sm:$0xff]
    %v143 = vld [vmem:[#allocation7 + $0x118] sm:$0xff]
    %v144 = vld [vmem:[#allocation7 + $0x120] sm:$0xff]
    %v145 = vld [vmem:[#allocation7 + $0x128] sm:$0xff]
    %v146 = vld [vmem:[#allocation7 + $0x130] sm:$0xff]
    %v147 = vld [vmem:[#allocation7 + $0x138] sm:$0xff]
    %v148 = vld [vmem:[#allocation7 + $0x140] sm:$0xff]
    %v149 = vld [vmem:[#allocation7 + $0x148] sm:$0xff]
    %v150 = vld [vmem:[#allocation7 + $0x150] sm:$0xff]
    %v151 = vld [vmem:[#allocation7 + $0x158] sm:$0xff]
    %v152 = vld [vmem:[#allocation7 + $0x160] sm:$0xff]
    %v153 = vld [vmem:[#allocation7 + $0x168] sm:$0xff]
    %v154 = vld [vmem:[#allocation7 + $0x170] sm:$0xff]
    %v155 = vld [vmem:[#allocation7 + $0x178] sm:$0xff]
    %v156 = vld [vmem:[#allocation7 + $0x180] sm:$0xff]
    %v157 = vld [vmem:[#allocation7 + $0x188] sm:$0xff]
    %v158 = vld [vmem:[#allocation7 + $0x190] sm:$0xff]
    %v159 = vld [vmem:[#allocation7 + $0x198] sm:$0xff]
    %v160 = vld [vmem:[#allocation7 + $0x1a0] sm:$0xff]
    %v161 = vld [vmem:[#allocation7 + $0x1a8] sm:$0xff]
    %v162 = vld [vmem:[#allocation7 + $0x1b0] sm:$0xff]
    %v163 = vld [vmem:[#allocation7 + $0x1b8] sm:$0xff]
    %v164 = vld [vmem:[#allocation7 + $0x1c0] sm:$0xff]
    %v165 = vld [vmem:[#allocation7 + $0x1c8] sm:$0xff]
    %v166 = vld [vmem:[#allocation7 + $0x1d0] sm:$0xff]
    %v167 = vld [vmem:[#allocation7 + $0x1d8] sm:$0xff]
    %v168 = vld [vmem:[#allocation7 + $0x1e0] sm:$0xff]
    %v169 = vld [vmem:[#allocation7 + $0x1e8] sm:$0xff]
    %v170 = vld [vmem:[#allocation7 + $0x1f0] sm:$0xff]
    %v171 = vld [vmem:[#allocation7 + $0x1f8] sm:$0xff]
    %v172 = vld [vmem:[#allocation10] sm:$0xf]
    %v174 = vperm.slane %v172, 0
    %v175 = vperm.slane %v172, 1
    %v176 = vperm.slane %v172, 2
    %v177 = vperm.slane %v172, 3
    %182 = vmatpush.msra.mxu0 %v168
    %183 = vmatpush.msra.mxu0 %v164
    %184 = vmatpush.msra.mxu0 %v160
    %185 = vmatpush.msra.mxu0 %v156
    %186 = vmatpush.msra.mxu0 %v152
    %187 = vmatpush.msra.mxu0 %v148
    %188 = vmatpush.msra.mxu0 %v144
    %189 = vmatpush.msra.mxu0 %v140
    %190 = vmatpush.msra.mxu0 %v136
    %191 = vmatpush.msra.mxu0 %v132
    %192 = vmatpush.msra.mxu0 %v128
    %193 = vmatpush.msra.mxu0 %v124
    %194 = vmatpush.msra.mxu0 %v120
    %195 = vmatpush.msra.mxu0 %v116
    %196 = vmatpush.msra.mxu0 %v112
    %197 = vmatpush.msra.mxu0 %v108
    %198 = vmatmul.f32.gmra.mxu0 %v100
    %v199 = vpop.f32.mrf.mxu0
    %v200 = vadd.f32 %v174, %v199
    %201 = vmatmul.f32.gmra.mxu0 %v101
    %v202 = vpop.f32.mrf.mxu0
    %v203 = vadd.f32 %v174, %v202
    %204 = vmatmul.f32.gmra.mxu0 %v102
    %v205 = vpop.f32.mrf.mxu0
    %v206 = vadd.f32 %v174, %v205
    %207 = vmatmul.f32.gmra.mxu0 %v103
    %v208 = vpop.f32.mrf.mxu0
    %v209 = vadd.f32 %v174, %v208
    %210 = vmatmul.f32.gmra.mxu0 %v104
    %v211 = vpop.f32.mrf.mxu0
    %v212 = vadd.f32 %v174, %v211
    %213 = vmatmul.f32.gmra.mxu0 %v105
    %v214 = vpop.f32.mrf.mxu0
    %v215 = vadd.f32 %v174, %v214
    %216 = vmatmul.f32.gmra.mxu0 %v106
    %v217 = vpop.f32.mrf.mxu0
    %v218 = vadd.f32 %v174, %v217
    %219 = vmatmul.f32.gmra.mxu0 %v107
    %v220 = vpop.f32.mrf.mxu0
    %v221 = vadd.f32 %v174, %v220
    %222 = vdwg.mxu0
    %223 = vmatpush.msra.mxu0 %v169
    %224 = vmatpush.msra.mxu0 %v165
    %225 = vmatpush.msra.mxu0 %v161
    %226 = vmatpush.msra.mxu0 %v157
    %227 = vmatpush.msra.mxu0 %v153
    %228 = vmatpush.msra.mxu0 %v149
    %229 = vmatpush.msra.mxu0 %v145
    %230 = vmatpush.msra.mxu0 %v141
    %231 = vmatpush.msra.mxu0 %v137
    %232 = vmatpush.msra.mxu0 %v133
    %233 = vmatpush.msra.mxu0 %v129
    %234 = vmatpush.msra.mxu0 %v125
    %235 = vmatpush.msra.mxu0 %v121
    %236 = vmatpush.msra.mxu0 %v117
    %237 = vmatpush.msra.mxu0 %v113
    %238 = vmatpush.msra.mxu0 %v109
    %239 = vmatmul.f32.gmra.mxu0 %v100
    %v240 = vpop.f32.mrf.mxu0
    %v241 = vadd.f32 %v175, %v240
    %242 = vmatmul.f32.gmra.mxu0 %v101
    %v243 = vpop.f32.mrf.mxu0
    %v244 = vadd.f32 %v175, %v243
    %245 = vmatmul.f32.gmra.mxu0 %v102
    %v246 = vpop.f32.mrf.mxu0
    %v247 = vadd.f32 %v175, %v246
    %248 = vmatmul.f32.gmra.mxu0 %v103
    %v249 = vpop.f32.mrf.mxu0
    %v250 = vadd.f32 %v175, %v249
    %251 = vmatmul.f32.gmra.mxu0 %v104
    %v252 = vpop.f32.mrf.mxu0
    %v253 = vadd.f32 %v175, %v252
    %254 = vmatmul.f32.gmra.mxu0 %v105
    %v255 = vpop.f32.mrf.mxu0
    %v256 = vadd.f32 %v175, %v255
    %257 = vmatmul.f32.gmra.mxu0 %v106
    %v258 = vpop.f32.mrf.mxu0
    %v259 = vadd.f32 %v175, %v258
    %260 = vmatmul.f32.gmra.mxu0 %v107
    %v261 = vpop.f32.mrf.mxu0
    %v262 = vadd.f32 %v175, %v261
    %263 = vdwg.mxu0
    %264 = vmatpush.msra.mxu0 %v170
    %265 = vmatpush.msra.mxu0 %v166
    %266 = vmatpush.msra.mxu0 %v162
    %267 = vmatpush.msra.mxu0 %v158
    %268 = vmatpush.msra.mxu0 %v154
    %269 = vmatpush.msra.mxu0 %v150
    %270 = vmatpush.msra.mxu0 %v146
    %271 = vmatpush.msra.mxu0 %v142
    %272 = vmatpush.msra.mxu0 %v138
    %273 = vmatpush.msra.mxu0 %v134
    %274 = vmatpush.msra.mxu0 %v130
    %275 = vmatpush.msra.mxu0 %v126
    %276 = vmatpush.msra.mxu0 %v122
    %277 = vmatpush.msra.mxu0 %v118
    %278 = vmatpush.msra.mxu0 %v114
    %279 = vmatpush.msra.mxu0 %v110
    %280 = vmatmul.f32.gmra.mxu0 %v100
    %v281 = vpop.f32.mrf.mxu0
    %v282 = vadd.f32 %v176, %v281
    %283 = vmatmul.f32.gmra.mxu0 %v101
    %v284 = vpop.f32.mrf.mxu0
    %v285 = vadd.f32 %v176, %v284
    %286 = vmatmul.f32.gmra.mxu0 %v102
    %v287 = vpop.f32.mrf.mxu0
    %v288 = vadd.f32 %v176, %v287
    %289 = vmatmul.f32.gmra.mxu0 %v103
    %v290 = vpop.f32.mrf.mxu0
    %v291 = vadd.f32 %v176, %v290
    %292 = vmatmul.f32.gmra.mxu0 %v104
    %v293 = vpop.f32.mrf.mxu0
    %v294 = vadd.f32 %v176, %v293
    %295 = vmatmul.f32.gmra.mxu0 %v105
    %v296 = vpop.f32.mrf.mxu0
    %v297 = vadd.f32 %v176, %v296
    %298 = vmatmul.f32.gmra.mxu0 %v106
    %v299 = vpop.f32.mrf.mxu0
    %v300 = vadd.f32 %v176, %v299
    %301 = vmatmul.f32.gmra.mxu0 %v107
    %v302 = vpop.f32.mrf.mxu0
    %v303 = vadd.f32 %v176, %v302
    %304 = vdwg.mxu0
    %305 = vmatpush.msra.mxu0 %v171
    %306 = vmatpush.msra.mxu0 %v167
    %307 = vmatpush.msra.mxu0 %v163
    %308 = vmatpush.msra.mxu0 %v159
    %309 = vmatpush.msra.mxu0 %v155
    %310 = vmatpush.msra.mxu0 %v151
    %311 = vmatpush.msra.mxu0 %v147
    %312 = vmatpush.msra.mxu0 %v143
    %313 = vmatpush.msra.mxu0 %v139
    %314 = vmatpush.msra.mxu0 %v135
    %315 = vmatpush.msra.mxu0 %v131
    %316 = vmatpush.msra.mxu0 %v127
    %317 = vmatpush.msra.mxu0 %v123
    %318 = vmatpush.msra.mxu0 %v119
    %319 = vmatpush.msra.mxu0 %v115
    %320 = vmatpush.msra.mxu0 %v111
    %321 = vmatmul.f32.gmra.mxu0 %v100
    %v322 = vpop.f32.mrf.mxu0
    %v323 = vadd.f32 %v177, %v322
    %324 = vmatmul.f32.gmra.mxu0 %v101
    %v325 = vpop.f32.mrf.mxu0
    %v326 = vadd.f32 %v177, %v325
    %327 = vmatmul.f32.gmra.mxu0 %v102
    %v328 = vpop.f32.mrf.mxu0
    %v329 = vadd.f32 %v177, %v328
    %330 = vmatmul.f32.gmra.mxu0 %v103
    %v331 = vpop.f32.mrf.mxu0
    %v332 = vadd.f32 %v177, %v331
    %333 = vmatmul.f32.gmra.mxu0 %v104
    %v334 = vpop.f32.mrf.mxu0
    %v335 = vadd.f32 %v177, %v334
    %336 = vmatmul.f32.gmra.mxu0 %v105
    %v337 = vpop.f32.mrf.mxu0
    %v338 = vadd.f32 %v177, %v337
    %339 = vmatmul.f32.gmra.mxu0 %v106
    %v340 = vpop.f32.mrf.mxu0
    %v341 = vadd.f32 %v177, %v340
    %342 = vmatmul.f32.gmra.mxu0 %v107
    %v343 = vpop.f32.mrf.mxu0
    %v344 = vadd.f32 %v177, %v343
    %345 = vdwg.mxu0
    %346 = vst [vmem:[#allocation2] sm:$0xff] %v200
    %347 = vst [vmem:[#allocation2 + $0x8] sm:$0xff] %v241
    %348 = vst [vmem:[#allocation2 + $0x10] sm:$0xff] %v282
    %349 = vst [vmem:[#allocation2 + $0x18] sm:$0xff] %v323
    %350 = vst [vmem:[#allocation2 + $0x20] sm:$0xff] %v203
    %351 = vst [vmem:[#allocation2 + $0x28] sm:$0xff] %v244
    %352 = vst [vmem:[#allocation2 + $0x30] sm:$0xff] %v285
    %353 = vst [vmem:[#allocation2 + $0x38] sm:$0xff] %v326
    %354 = vst [vmem:[#allocation2 + $0x40] sm:$0xff] %v206
    %355 = vst [vmem:[#allocation2 + $0x48] sm:$0xff] %v247
    %356 = vst [vmem:[#allocation2 + $0x50] sm:$0xff] %v288
    %357 = vst [vmem:[#allocation2 + $0x58] sm:$0xff] %v329
    %358 = vst [vmem:[#allocation2 + $0x60] sm:$0xff] %v209
    %359 = vst [vmem:[#allocation2 + $0x68] sm:$0xff] %v250
    %360 = vst [vmem:[#allocation2 + $0x70] sm:$0xff] %v291
    %361 = vst [vmem:[#allocation2 + $0x78] sm:$0xff] %v332
    %362 = vst [vmem:[#allocation2 + $0x80] sm:$0xff] %v212
    %363 = vst [vmem:[#allocation2 + $0x88] sm:$0xff] %v253
    %364 = vst [vmem:[#allocation2 + $0x90] sm:$0xff] %v294
    %365 = vst [vmem:[#allocation2 + $0x98] sm:$0xff] %v335
    %366 = vst [vmem:[#allocation2 + $0xa0] sm:$0xff] %v215
    %367 = vst [vmem:[#allocation2 + $0xa8] sm:$0xff] %v256
    %368 = vst [vmem:[#allocation2 + $0xb0] sm:$0xff] %v297
    %369 = vst [vmem:[#allocation2 + $0xb8] sm:$0xff] %v338
    %370 = vst [vmem:[#allocation2 + $0xc0] sm:$0xff] %v218
    %371 = vst [vmem:[#allocation2 + $0xc8] sm:$0xff] %v259
    %372 = vst [vmem:[#allocation2 + $0xd0] sm:$0xff] %v300
    %373 = vst [vmem:[#allocation2 + $0xd8] sm:$0xff] %v341
    %374 = vst [vmem:[#allocation2 + $0xe0] sm:$0xff] %v221
    %375 = vst [vmem:[#allocation2 + $0xe8] sm:$0xff] %v262
    %376 = vst [vmem:[#allocation2 + $0xf0] sm:$0xff] %v303
    %377 = vst [vmem:[#allocation2 + $0xf8] sm:$0xff] %v344
    %v378 = vld [vmem:[#allocation9] sm:$0xff]
    %v379 = vld [vmem:[#allocation9 + $0x8] sm:$0xff]
    %v380 = vld [vmem:[#allocation9 + $0x10] sm:$0xff]
    %v381 = vld [vmem:[#allocation9 + $0x18] sm:$0xff]
    %v382 = vld [vmem:[#allocation9 + $0x20] sm:$0xff]
    %v383 = vld [vmem:[#allocation9 + $0x28] sm:$0xff]
    %v384 = vld [vmem:[#allocation9 + $0x30] sm:$0xff]
    %v385 = vld [vmem:[#allocation9 + $0x38] sm:$0xff]
    %v386 = vld [vmem:[#allocation9 + $0x40] sm:$0xff]
    %v387 = vld [vmem:[#allocation9 + $0x48] sm:$0xff]
    %v388 = vld [vmem:[#allocation9 + $0x50] sm:$0xff]
    %v389 = vld [vmem:[#allocation9 + $0x58] sm:$0xff]
    %v390 = vld [vmem:[#allocation9 + $0x60] sm:$0xff]
    %v391 = vld [vmem:[#allocation9 + $0x68] sm:$0xff]
    %v392 = vld [vmem:[#allocation9 + $0x70] sm:$0xff]
    %v393 = vld [vmem:[#allocation9 + $0x78] sm:$0xff]
    %v394 = vld [vmem:[#allocation9 + $0x80] sm:$0xff]
    %v395 = vld [vmem:[#allocation9 + $0x88] sm:$0xff]
    %v396 = vld [vmem:[#allocation9 + $0x90] sm:$0xff]
    %v397 = vld [vmem:[#allocation9 + $0x98] sm:$0xff]
    %v398 = vld [vmem:[#allocation9 + $0xa0] sm:$0xff]
    %v399 = vld [vmem:[#allocation9 + $0xa8] sm:$0xff]
    %v400 = vld [vmem:[#allocation9 + $0xb0] sm:$0xff]
    %v401 = vld [vmem:[#allocation9 + $0xb8] sm:$0xff]
    %v402 = vld [vmem:[#allocation9 + $0xc0] sm:$0xff]
    %v403 = vld [vmem:[#allocation9 + $0xc8] sm:$0xff]
    %v404 = vld [vmem:[#allocation9 + $0xd0] sm:$0xff]
    %v405 = vld [vmem:[#allocation9 + $0xd8] sm:$0xff]
    %v406 = vld [vmem:[#allocation9 + $0xe0] sm:$0xff]
    %v407 = vld [vmem:[#allocation9 + $0xe8] sm:$0xff]
    %v408 = vld [vmem:[#allocation9 + $0xf0] sm:$0xff]
    %v409 = vld [vmem:[#allocation9 + $0xf8] sm:$0xff]
    %v410 = vld [vmem:[#allocation9 + $0x100] sm:$0xff]
    %v411 = vld [vmem:[#allocation9 + $0x108] sm:$0xff]
    %v412 = vld [vmem:[#allocation9 + $0x110] sm:$0xff]
    %v413 = vld [vmem:[#allocation9 + $0x118] sm:$0xff]
    %v414 = vld [vmem:[#allocation9 + $0x120] sm:$0xff]
    %v415 = vld [vmem:[#allocation9 + $0x128] sm:$0xff]
    %v416 = vld [vmem:[#allocation9 + $0x130] sm:$0xff]
    %v417 = vld [vmem:[#allocation9 + $0x138] sm:$0xff]
    %v418 = vld [vmem:[#allocation9 + $0x140] sm:$0xff]
    %v419 = vld [vmem:[#allocation9 + $0x148] sm:$0xff]
    %v420 = vld [vmem:[#allocation9 + $0x150] sm:$0xff]
    %v421 = vld [vmem:[#allocation9 + $0x158] sm:$0xff]
    %v422 = vld [vmem:[#allocation9 + $0x160] sm:$0xff]
    %v423 = vld [vmem:[#allocation9 + $0x168] sm:$0xff]
    %v424 = vld [vmem:[#allocation9 + $0x170] sm:$0xff]
    %v425 = vld [vmem:[#allocation9 + $0x178] sm:$0xff]
    %v426 = vld [vmem:[#allocation9 + $0x180] sm:$0xff]
    %v427 = vld [vmem:[#allocation9 + $0x188] sm:$0xff]
    %v428 = vld [vmem:[#allocation9 + $0x190] sm:$0xff]
    %v429 = vld [vmem:[#allocation9 + $0x198] sm:$0xff]
    %v430 = vld [vmem:[#allocation9 + $0x1a0] sm:$0xff]
    %v431 = vld [vmem:[#allocation9 + $0x1a8] sm:$0xff]
    %v432 = vld [vmem:[#allocation9 + $0x1b0] sm:$0xff]
    %v433 = vld [vmem:[#allocation9 + $0x1b8] sm:$0xff]
    %v434 = vld [vmem:[#allocation9 + $0x1c0] sm:$0xff]
    %v435 = vld [vmem:[#allocation9 + $0x1c8] sm:$0xff]
    %v436 = vld [vmem:[#allocation9 + $0x1d0] sm:$0xff]
    %v437 = vld [vmem:[#allocation9 + $0x1d8] sm:$0xff]
    %v438 = vld [vmem:[#allocation9 + $0x1e0] sm:$0xff]
    %v439 = vld [vmem:[#allocation9 + $0x1e8] sm:$0xff]
    %v440 = vld [vmem:[#allocation9 + $0x1f0] sm:$0xff]
    %v441 = vld [vmem:[#allocation9 + $0x1f8] sm:$0xff]
    %v442 = vld [vmem:[#allocation2] sm:$0xff]
    %v443 = vld [vmem:[#allocation2 + $0x8] sm:$0xff]
    %v444 = vld [vmem:[#allocation2 + $0x10] sm:$0xff]
    %v445 = vld [vmem:[#allocation2 + $0x18] sm:$0xff]
    %446 = vmatpush.msra.mxu0 %v438
    %447 = vmatpush.msra.mxu0 %v434
    %448 = vmatpush.msra.mxu0 %v430
    %449 = vmatpush.msra.mxu0 %v426
    %450 = vmatpush.msra.mxu0 %v422
    %451 = vmatpush.msra.mxu0 %v418
    %452 = vmatpush.msra.mxu0 %v414
    %453 = vmatpush.msra.mxu0 %v410
    %454 = vmatpush.msra.mxu0 %v406
    %455 = vmatpush.msra.mxu0 %v402
    %456 = vmatpush.msra.mxu0 %v398
    %457 = vmatpush.msra.mxu0 %v394
    %458 = vmatpush.msra.mxu0 %v390
    %459 = vmatpush.msra.mxu0 %v386
    %460 = vmatpush.msra.mxu0 %v382
    %461 = vmatpush.msra.mxu0 %v378
    %462 = vmatmul.f32.gmra.mxu0 0.0
    %v463 = vpop.f32.mrf.mxu0
    %v464 = vadd.f32 0.0, %v463
    %465 = vdwg.mxu0
    %466 = vmatpush.msra.mxu0 %v439
    %467 = vmatpush.msra.mxu0 %v435
    %468 = vmatpush.msra.mxu0 %v431
    %469 = vmatpush.msra.mxu0 %v427
    %470 = vmatpush.msra.mxu0 %v423
    %471 = vmatpush.msra.mxu0 %v419
    %472 = vmatpush.msra.mxu0 %v415
    %473 = vmatpush.msra.mxu0 %v411
    %474 = vmatpush.msra.mxu0 %v407
    %475 = vmatpush.msra.mxu0 %v403
    %476 = vmatpush.msra.mxu0 %v399
    %477 = vmatpush.msra.mxu0 %v395
    %478 = vmatpush.msra.mxu0 %v391
    %479 = vmatpush.msra.mxu0 %v387
    %480 = vmatpush.msra.mxu0 %v383
    %481 = vmatpush.msra.mxu0 %v379
    %482 = vmatmul.f32.gmra.mxu0 0.0
    %v483 = vpop.f32.mrf.mxu0
    %v484 = vadd.f32 0.0, %v483
    %485 = vdwg.mxu0
    %486 = vmatpush.msra.mxu0 %v440
    %487 = vmatpush.msra.mxu0 %v436
    %488 = vmatpush.msra.mxu0 %v432
    %489 = vmatpush.msra.mxu0 %v428
    %490 = vmatpush.msra.mxu0 %v424
    %491 = vmatpush.msra.mxu0 %v420
    %492 = vmatpush.msra.mxu0 %v416
    %493 = vmatpush.msra.mxu0 %v412
    %494 = vmatpush.msra.mxu0 %v408
    %495 = vmatpush.msra.mxu0 %v404
    %496 = vmatpush.msra.mxu0 %v400
    %497 = vmatpush.msra.mxu0 %v396
    %498 = vmatpush.msra.mxu0 %v392
    %499 = vmatpush.msra.mxu0 %v388
    %500 = vmatpush.msra.mxu0 %v384
    %501 = vmatpush.msra.mxu0 %v380
    %502 = vmatmul.f32.gmra.mxu0 0.0
    %v503 = vpop.f32.mrf.mxu0
    %v504 = vadd.f32 0.0, %v503
    %505 = vdwg.mxu0
    %506 = vmatpush.msra.mxu0 %v441
    %507 = vmatpush.msra.mxu0 %v437
    %508 = vmatpush.msra.mxu0 %v433
    %509 = vmatpush.msra.mxu0 %v429
    %510 = vmatpush.msra.mxu0 %v425
    %511 = vmatpush.msra.mxu0 %v421
    %512 = vmatpush.msra.mxu0 %v417
    %513 = vmatpush.msra.mxu0 %v413
    %514 = vmatpush.msra.mxu0 %v409
    %515 = vmatpush.msra.mxu0 %v405
    %516 = vmatpush.msra.mxu0 %v401
    %517 = vmatpush.msra.mxu0 %v397
    %518 = vmatpush.msra.mxu0 %v393
    %519 = vmatpush.msra.mxu0 %v389
    %520 = vmatpush.msra.mxu0 %v385
    %521 = vmatpush.msra.mxu0 %v381
    %522 = vmatmul.f32.gmra.mxu0 0.0
    %v523 = vpop.f32.mrf.mxu0
    %v524 = vadd.f32 0.0, %v523
    %525 = vdwg.mxu0
    %v526 = vadd.f32 %v442, %v464
    %v527 = vadd.f32 %v443, %v484
    %v528 = vadd.f32 %v444, %v504
    %v529 = vadd.f32 %v445, %v524
    %v530 = vxor.u32 %v526, 2147483648
    %v531 = vmul.f32 %v530, 1.442695
    %v532 = vpow.pop %v531
    %v533 = vadd.f32 %v532, 1.0
    %v534 = vrcp.pop %v533
    %v535 = vmul.f32 %v533, %v534
    %v536 = vsub.f32 1.0, %v535
    %v537 = vmul.f32 %v534, %v536
    %v538 = vadd.f32 %v534, %v537
    %vm539 = vweird.f32 %v533
    %vm540 = vweird.f32 %v534
    %vm541 = vmor %vm539, %vm540
    %v542 = vsel %vm541, %v534, %v538
    %v543 = vand.u32 2147483647, %v533
    %vm544 = vcmp.eq.f32.partialorder %v543, 8.507059e+37
    %v545 = vand.u32 %v533, 2147483648
    %v546 = vor.u32 1.1754944e-38, %v545
    %v547 = vsel %vm544, %v546, %v542
    %v548 = vmul.f32 1.0, %v547
    %v549 = vxor.u32 %v527, 2147483648
    %v550 = vmul.f32 %v549, 1.442695
    %v551 = vpow.pop %v550
    %v552 = vadd.f32 %v551, 1.0
    %v553 = vrcp.pop %v552
    %v554 = vmul.f32 %v552, %v553
    %v555 = vsub.f32 1.0, %v554
    %v556 = vmul.f32 %v553, %v555
    %v557 = vadd.f32 %v553, %v556
    %vm558 = vweird.f32 %v552
    %vm559 = vweird.f32 %v553
    %vm560 = vmor %vm558, %vm559
    %v561 = vsel %vm560, %v553, %v557
    %v562 = vand.u32 2147483647, %v552
    %vm563 = vcmp.eq.f32.partialorder %v562, 8.507059e+37
    %v564 = vand.u32 %v552, 2147483648
    %v565 = vor.u32 1.1754944e-38, %v564
    %v566 = vsel %vm563, %v565, %v561
    %v567 = vmul.f32 1.0, %v566
    %v568 = vtanh.pop %v528
    %v569 = vxor.u32 %v529, 2147483648
    %v570 = vmul.f32 %v569, 1.442695
    %v571 = vpow.pop %v570
    %v572 = vadd.f32 %v571, 1.0
    %v573 = vrcp.pop %v572
    %v574 = vmul.f32 %v572, %v573
    %v575 = vsub.f32 1.0, %v574
    %v576 = vmul.f32 %v573, %v575
    %v577 = vadd.f32 %v573, %v576
    %vm578 = vweird.f32 %v572
    %vm579 = vweird.f32 %v573
    %vm580 = vmor %vm578, %vm579
    %v581 = vsel %vm580, %v573, %v577
    %v582 = vand.u32 2147483647, %v572
    %vm583 = vcmp.eq.f32.partialorder %v582, 8.507059e+37
    %v584 = vand.u32 %v572, 2147483648
    %v585 = vor.u32 1.1754944e-38, %v584
    %v586 = vsel %vm583, %v585, %v581
    %v587 = vmul.f32 1.0, %v586
    %v588 = vmul.f32 %v567, 0.0
    %v589 = vmul.f32 %v548, %v568
    %v590 = vadd.f32 %v588, %v589
    %v591 = vtanh.pop %v590
    %v592 = vmul.f32 %v587, %v591
    %593 = vst [vmem:[#allocation3] sm:$0xff] %v592
    %s594 = scalar_lea.vmem [#allocation2], 32
    %v595 = vld [vmem:[%s594] sm:$0xff]
    %v596 = vld [vmem:[%s594 + $0x8] sm:$0xff]
    %v597 = vld [vmem:[%s594 + $0x10] sm:$0xff]
    %v598 = vld [vmem:[%s594 + $0x18] sm:$0xff]
    %599 = vmatpush.msra.mxu0 %v438
    %600 = vmatpush.msra.mxu0 %v434
    %601 = vmatpush.msra.mxu0 %v430
    %602 = vmatpush.msra.mxu0 %v426
    %603 = vmatpush.msra.mxu0 %v422
    %604 = vmatpush.msra.mxu0 %v418
    %605 = vmatpush.msra.mxu0 %v414
    %606 = vmatpush.msra.mxu0 %v410
    %607 = vmatpush.msra.mxu0 %v406
    %608 = vmatpush.msra.mxu0 %v402
    %609 = vmatpush.msra.mxu0 %v398
    %610 = vmatpush.msra.mxu0 %v394
    %611 = vmatpush.msra.mxu0 %v390
    %612 = vmatpush.msra.mxu0 %v386
    %613 = vmatpush.msra.mxu0 %v382
    %614 = vmatpush.msra.mxu0 %v378
    %615 = vmatmul.f32.gmra.mxu0 %v592
    %v616 = vpop.f32.mrf.mxu0
    %v617 = vadd.f32 0.0, %v616
    %618 = vdwg.mxu0
    %619 = vmatpush.msra.mxu0 %v439
    %620 = vmatpush.msra.mxu0 %v435
    %621 = vmatpush.msra.mxu0 %v431
    %622 = vmatpush.msra.mxu0 %v427
    %623 = vmatpush.msra.mxu0 %v423
    %624 = vmatpush.msra.mxu0 %v419
    %625 = vmatpush.msra.mxu0 %v415
    %626 = vmatpush.msra.mxu0 %v411
    %627 = vmatpush.msra.mxu0 %v407
    %628 = vmatpush.msra.mxu0 %v403
    %629 = vmatpush.msra.mxu0 %v399
    %630 = vmatpush.msra.mxu0 %v395
    %631 = vmatpush.msra.mxu0 %v391
    %632 = vmatpush.msra.mxu0 %v387
    %633 = vmatpush.msra.mxu0 %v383
    %634 = vmatpush.msra.mxu0 %v379
    %635 = vmatmul.f32.gmra.mxu0 %v592
    %v636 = vpop.f32.mrf.mxu0
    %v637 = vadd.f32 0.0, %v636
    %638 = vdwg.mxu0
    %639 = vmatpush.msra.mxu0 %v440
    %640 = vmatpush.msra.mxu0 %v436
    %641 = vmatpush.msra.mxu0 %v432
    %642 = vmatpush.msra.mxu0 %v428
    %643 = vmatpush.msra.mxu0 %v424
    %644 = vmatpush.msra.mxu0 %v420
    %645 = vmatpush.msra.mxu0 %v416
    %646 = vmatpush.msra.mxu0 %v412
    %647 = vmatpush.msra.mxu0 %v408
    %648 = vmatpush.msra.mxu0 %v404
    %649 = vmatpush.msra.mxu0 %v400
    %650 = vmatpush.msra.mxu0 %v396
    %651 = vmatpush.msra.mxu0 %v392
    %652 = vmatpush.msra.mxu0 %v388
    %653 = vmatpush.msra.mxu0 %v384
    %654 = vmatpush.msra.mxu0 %v380
    %655 = vmatmul.f32.gmra.mxu0 %v592
    %v656 = vpop.f32.mrf.mxu0
    %v657 = vadd.f32 0.0, %v656
    %658 = vdwg.mxu0
    %659 = vmatpush.msra.mxu0 %v441
    %660 = vmatpush.msra.mxu0 %v437
    %661 = vmatpush.msra.mxu0 %v433
    %662 = vmatpush.msra.mxu0 %v429
    %663 = vmatpush.msra.mxu0 %v425
    %664 = vmatpush.msra.mxu0 %v421
    %665 = vmatpush.msra.mxu0 %v417
    %666 = vmatpush.msra.mxu0 %v413
    %667 = vmatpush.msra.mxu0 %v409
    %668 = vmatpush.msra.mxu0 %v405
    %669 = vmatpush.msra.mxu0 %v401
    %670 = vmatpush.msra.mxu0 %v397
    %671 = vmatpush.msra.mxu0 %v393
    %672 = vmatpush.msra.mxu0 %v389
    %673 = vmatpush.msra.mxu0 %v385
    %674 = vmatpush.msra.mxu0 %v381
    %675 = vmatmul.f32.gmra.mxu0 %v592
    %v676 = vpop.f32.mrf.mxu0
    %v677 = vadd.f32 0.0, %v676
    %678 = vdwg.mxu0
    %v679 = vadd.f32 %v595, %v617
    %v680 = vadd.f32 %v596, %v637
    %v681 = vadd.f32 %v597, %v657
    %v682 = vadd.f32 %v598, %v677
    %v683 = vxor.u32 %v679, 2147483648
    %v684 = vmul.f32 %v683, 1.442695
    %v685 = vpow.pop %v684
    %v686 = vadd.f32 %v685, 1.0
    %v687 = vrcp.pop %v686
    %v688 = vmul.f32 %v686, %v687
    %v689 = vsub.f32 1.0, %v688
    %v690 = vmul.f32 %v687, %v689
    %v691 = vadd.f32 %v687, %v690
    %vm692 = vweird.f32 %v686
    %vm693 = vweird.f32 %v687
    %vm694 = vmor %vm692, %vm693
    %v695 = vsel %vm694, %v687, %v691
    %v696 = vand.u32 2147483647, %v686
    %vm697 = vcmp.eq.f32.partialorder %v696, 8.507059e+37
    %v698 = vand.u32 %v686, 2147483648
    %v699 = vor.u32 1.1754944e-38, %v698
    %v700 = vsel %vm697, %v699, %v695
    %v701 = vmul.f32 1.0, %v700
    %v702 = vxor.u32 %v680, 2147483648
    %v703 = vmul.f32 %v702, 1.442695
    %v704 = vpow.pop %v703
    %v705 = vadd.f32 %v704, 1.0
    %v706 = vrcp.pop %v705
    %v707 = vmul.f32 %v705, %v706
    %v708 = vsub.f32 1.0, %v707
    %v709 = vmul.f32 %v706, %v708
    %v710 = vadd.f32 %v706, %v709
    %vm711 = vweird.f32 %v705
    %vm712 = vweird.f32 %v706
    %vm713 = vmor %vm711, %vm712
    %v714 = vsel %vm713, %v706, %v710
    %v715 = vand.u32 2147483647, %v705
    %vm716 = vcmp.eq.f32.partialorder %v715, 8.507059e+37
    %v717 = vand.u32 %v705, 2147483648
    %v718 = vor.u32 1.1754944e-38, %v717
    %v719 = vsel %vm716, %v718, %v714
    %v720 = vmul.f32 1.0, %v719
    %v721 = vtanh.pop %v681
    %v722 = vxor.u32 %v682, 2147483648
    %v723 = vmul.f32 %v722, 1.442695
    %v724 = vpow.pop %v723
    %v725 = vadd.f32 %v724, 1.0
    %v726 = vrcp.pop %v725
    %v727 = vmul.f32 %v725, %v726
    %v728 = vsub.f32 1.0, %v727
    %v729 = vmul.f32 %v726, %v728
    %v730 = vadd.f32 %v726, %v729
    %vm731 = vweird.f32 %v725
    %vm732 = vweird.f32 %v726
    %vm733 = vmor %vm731, %vm732
    %v734 = vsel %vm733, %v726, %v730
    %v735 = vand.u32 2147483647, %v725
    %vm736 = vcmp.eq.f32.partialorder %v735, 8.507059e+37
    %v737 = vand.u32 %v725, 2147483648
    %v738 = vor.u32 1.1754944e-38, %v737
    %v739 = vsel %vm736, %v738, %v734
    %v740 = vmul.f32 1.0, %v739
    %v741 = vmul.f32 %v720, %v590
    %v742 = vmul.f32 %v701, %v721
    %v743 = vadd.f32 %v741, %v742
    %v744 = vtanh.pop %v743
    %v745 = vmul.f32 %v740, %v744
    %s746 = scalar_lea.vmem [#allocation3], 8
    %747 = vst [vmem:[%s746] sm:$0xff] %v745
    %s748 = scalar_lea.vmem [#allocation2], 64
    %v749 = vld [vmem:[%s748] sm:$0xff]
    %v750 = vld [vmem:[%s748 + $0x8] sm:$0xff]
    %v751 = vld [vmem:[%s748 + $0x10] sm:$0xff]
    %v752 = vld [vmem:[%s748 + $0x18] sm:$0xff]
    %753 = vmatpush.msra.mxu0 %v438
    %754 = vmatpush.msra.mxu0 %v434
    %755 = vmatpush.msra.mxu0 %v430
    %756 = vmatpush.msra.mxu0 %v426
    %757 = vmatpush.msra.mxu0 %v422
    %758 = vmatpush.msra.mxu0 %v418
    %759 = vmatpush.msra.mxu0 %v414
    %760 = vmatpush.msra.mxu0 %v410
    %761 = vmatpush.msra.mxu0 %v406
    %762 = vmatpush.msra.mxu0 %v402
    %763 = vmatpush.msra.mxu0 %v398
    %764 = vmatpush.msra.mxu0 %v394
    %765 = vmatpush.msra.mxu0 %v390
    %766 = vmatpush.msra.mxu0 %v386
    %767 = vmatpush.msra.mxu0 %v382
    %768 = vmatpush.msra.mxu0 %v378
    %769 = vmatmul.f32.gmra.mxu0 %v745
    %v770 = vpop.f32.mrf.mxu0
    %v771 = vadd.f32 0.0, %v770
    %772 = vdwg.mxu0
    %773 = vmatpush.msra.mxu0 %v439
    %774 = vmatpush.msra.mxu0 %v435
    %775 = vmatpush.msra.mxu0 %v431
    %776 = vmatpush.msra.mxu0 %v427
    %777 = vmatpush.msra.mxu0 %v423
    %778 = vmatpush.msra.mxu0 %v419
    %779 = vmatpush.msra.mxu0 %v415
    %780 = vmatpush.msra.mxu0 %v411
    %781 = vmatpush.msra.mxu0 %v407
    %782 = vmatpush.msra.mxu0 %v403
    %783 = vmatpush.msra.mxu0 %v399
    %784 = vmatpush.msra.mxu0 %v395
    %785 = vmatpush.msra.mxu0 %v391
    %786 = vmatpush.msra.mxu0 %v387
    %787 = vmatpush.msra.mxu0 %v383
    %788 = vmatpush.msra.mxu0 %v379
    %789 = vmatmul.f32.gmra.mxu0 %v745
    %v790 = vpop.f32.mrf.mxu0
    %v791 = vadd.f32 0.0, %v790
    %792 = vdwg.mxu0
    %793 = vmatpush.msra.mxu0 %v440
    %794 = vmatpush.msra.mxu0 %v436
    %795 = vmatpush.msra.mxu0 %v432
    %796 = vmatpush.msra.mxu0 %v428
    %797 = vmatpush.msra.mxu0 %v424
    %798 = vmatpush.msra.mxu0 %v420
    %799 = vmatpush.msra.mxu0 %v416
    %800 = vmatpush.msra.mxu0 %v412
    %801 = vmatpush.msra.mxu0 %v408
    %802 = vmatpush.msra.mxu0 %v404
    %803 = vmatpush.msra.mxu0 %v400
    %804 = vmatpush.msra.mxu0 %v396
    %805 = vmatpush.msra.mxu0 %v392
    %806 = vmatpush.msra.mxu0 %v388
    %807 = vmatpush.msra.mxu0 %v384
    %808 = vmatpush.msra.mxu0 %v380
    %809 = vmatmul.f32.gmra.mxu0 %v745
    %v810 = vpop.f32.mrf.mxu0
    %v811 = vadd.f32 0.0, %v810
    %812 = vdwg.mxu0
    %813 = vmatpush.msra.mxu0 %v441
    %814 = vmatpush.msra.mxu0 %v437
    %815 = vmatpush.msra.mxu0 %v433
    %816 = vmatpush.msra.mxu0 %v429
    %817 = vmatpush.msra.mxu0 %v425
    %818 = vmatpush.msra.mxu0 %v421
    %819 = vmatpush.msra.mxu0 %v417
    %820 = vmatpush.msra.mxu0 %v413
    %821 = vmatpush.msra.mxu0 %v409
    %822 = vmatpush.msra.mxu0 %v405
    %823 = vmatpush.msra.mxu0 %v401
    %824 = vmatpush.msra.mxu0 %v397
    %825 = vmatpush.msra.mxu0 %v393
    %826 = vmatpush.msra.mxu0 %v389
    %827 = vmatpush.msra.mxu0 %v385
    %828 = vmatpush.msra.mxu0 %v381
    %829 = vmatmul.f32.gmra.mxu0 %v745
    %v830 = vpop.f32.mrf.mxu0
    %v831 = vadd.f32 0.0, %v830
    %832 = vdwg.mxu0
    %v833 = vadd.f32 %v749, %v771
    %v834 = vadd.f32 %v750, %v791
    %v835 = vadd.f32 %v751, %v811
    %v836 = vadd.f32 %v752, %v831
    %v837 = vxor.u32 %v833, 2147483648
    %v838 = vmul.f32 %v837, 1.442695
    %v839 = vpow.pop %v838
    %v840 = vadd.f32 %v839, 1.0
    %v841 = vrcp.pop %v840
    %v842 = vmul.f32 %v840, %v841
    %v843 = vsub.f32 1.0, %v842
    %v844 = vmul.f32 %v841, %v843
    %v845 = vadd.f32 %v841, %v844
    %vm846 = vweird.f32 %v840
    %vm847 = vweird.f32 %v841
    %vm848 = vmor %vm846, %vm847
    %v849 = vsel %vm848, %v841, %v845
    %v850 = vand.u32 2147483647, %v840
    %vm851 = vcmp.eq.f32.partialorder %v850, 8.507059e+37
    %v852 = vand.u32 %v840, 2147483648
    %v853 = vor.u32 1.1754944e-38, %v852
    %v854 = vsel %vm851, %v853, %v849
    %v855 = vmul.f32 1.0, %v854
    %v856 = vxor.u32 %v834, 2147483648
    %v857 = vmul.f32 %v856, 1.442695
    %v858 = vpow.pop %v857
    %v859 = vadd.f32 %v858, 1.0
    %v860 = vrcp.pop %v859
    %v861 = vmul.f32 %v859, %v860
    %v862 = vsub.f32 1.0, %v861
    %v863 = vmul.f32 %v860, %v862
    %v864 = vadd.f32 %v860, %v863
    %vm865 = vweird.f32 %v859
    %vm866 = vweird.f32 %v860
    %vm867 = vmor %vm865, %vm866
    %v868 = vsel %vm867, %v860, %v864
    %v869 = vand.u32 2147483647, %v859
    %vm870 = vcmp.eq.f32.partialorder %v869, 8.507059e+37
    %v871 = vand.u32 %v859, 2147483648
    %v872 = vor.u32 1.1754944e-38, %v871
    %v873 = vsel %vm870, %v872, %v868
    %v874 = vmul.f32 1.0, %v873
    %v875 = vtanh.pop %v835
    %v876 = vxor.u32 %v836, 2147483648
    %v877 = vmul.f32 %v876, 1.442695
    %v878 = vpow.pop %v877
    %v879 = vadd.f32 %v878, 1.0
    %v880 = vrcp.pop %v879
    %v881 = vmul.f32 %v879, %v880
    %v882 = vsub.f32 1.0, %v881
    %v883 = vmul.f32 %v880, %v882
    %v884 = vadd.f32 %v880, %v883
    %vm885 = vweird.f32 %v879
    %vm886 = vweird.f32 %v880
    %vm887 = vmor %vm885, %vm886
    %v888 = vsel %vm887, %v880, %v884
    %v889 = vand.u32 2147483647, %v879
    %vm890 = vcmp.eq.f32.partialorder %v889, 8.507059e+37
    %v891 = vand.u32 %v879, 2147483648
    %v892 = vor.u32 1.1754944e-38, %v891
    %v893 = vsel %vm890, %v892, %v888
    %v894 = vmul.f32 1.0, %v893
    %v895 = vmul.f32 %v874, %v743
    %v896 = vmul.f32 %v855, %v875
    %v897 = vadd.f32 %v895, %v896
    %v898 = vtanh.pop %v897
    %v899 = vmul.f32 %v894, %v898
    %s900 = scalar_lea.vmem [#allocation3], 16
    %901 = vst [vmem:[%s900] sm:$0xff] %v899
    %s902 = scalar_lea.vmem [#allocation2], 96
    %v903 = vld [vmem:[%s902] sm:$0xff]
    %v904 = vld [vmem:[%s902 + $0x8] sm:$0xff]
    %v905 = vld [vmem:[%s902 + $0x10] sm:$0xff]
    %v906 = vld [vmem:[%s902 + $0x18] sm:$0xff]
    %907 = vmatpush.msra.mxu0 %v438
    %908 = vmatpush.msra.mxu0 %v434
    %909 = vmatpush.msra.mxu0 %v430
    %910 = vmatpush.msra.mxu0 %v426
    %911 = vmatpush.msra.mxu0 %v422
    %912 = vmatpush.msra.mxu0 %v418
    %913 = vmatpush.msra.mxu0 %v414
    %914 = vmatpush.msra.mxu0 %v410
    %915 = vmatpush.msra.mxu0 %v406
    %916 = vmatpush.msra.mxu0 %v402
    %917 = vmatpush.msra.mxu0 %v398
    %918 = vmatpush.msra.mxu0 %v394
    %919 = vmatpush.msra.mxu0 %v390
    %920 = vmatpush.msra.mxu0 %v386
    %921 = vmatpush.msra.mxu0 %v382
    %922 = vmatpush.msra.mxu0 %v378
    %923 = vmatmul.f32.gmra.mxu0 %v899
    %v924 = vpop.f32.mrf.mxu0
    %v925 = vadd.f32 0.0, %v924
    %926 = vdwg.mxu0
    %927 = vmatpush.msra.mxu0 %v439
    %928 = vmatpush.msra.mxu0 %v435
    %929 = vmatpush.msra.mxu0 %v431
    %930 = vmatpush.msra.mxu0 %v427
    %931 = vmatpush.msra.mxu0 %v423
    %932 = vmatpush.msra.mxu0 %v419
    %933 = vmatpush.msra.mxu0 %v415
    %934 = vmatpush.msra.mxu0 %v411
    %935 = vmatpush.msra.mxu0 %v407
    %936 = vmatpush.msra.mxu0 %v403
    %937 = vmatpush.msra.mxu0 %v399
    %938 = vmatpush.msra.mxu0 %v395
    %939 = vmatpush.msra.mxu0 %v391
    %940 = vmatpush.msra.mxu0 %v387
    %941 = vmatpush.msra.mxu0 %v383
    %942 = vmatpush.msra.mxu0 %v379
    %943 = vmatmul.f32.gmra.mxu0 %v899
    %v944 = vpop.f32.mrf.mxu0
    %v945 = vadd.f32 0.0, %v944
    %946 = vdwg.mxu0
    %947 = vmatpush.msra.mxu0 %v440
    %948 = vmatpush.msra.mxu0 %v436
    %949 = vmatpush.msra.mxu0 %v432
    %950 = vmatpush.msra.mxu0 %v428
    %951 = vmatpush.msra.mxu0 %v424
    %952 = vmatpush.msra.mxu0 %v420
    %953 = vmatpush.msra.mxu0 %v416
    %954 = vmatpush.msra.mxu0 %v412
    %955 = vmatpush.msra.mxu0 %v408
    %956 = vmatpush.msra.mxu0 %v404
    %957 = vmatpush.msra.mxu0 %v400
    %958 = vmatpush.msra.mxu0 %v396
    %959 = vmatpush.msra.mxu0 %v392
    %960 = vmatpush.msra.mxu0 %v388
    %961 = vmatpush.msra.mxu0 %v384
    %962 = vmatpush.msra.mxu0 %v380
    %963 = vmatmul.f32.gmra.mxu0 %v899
    %v964 = vpop.f32.mrf.mxu0
    %v965 = vadd.f32 0.0, %v964
    %966 = vdwg.mxu0
    %967 = vmatpush.msra.mxu0 %v441
    %968 = vmatpush.msra.mxu0 %v437
    %969 = vmatpush.msra.mxu0 %v433
    %970 = vmatpush.msra.mxu0 %v429
    %971 = vmatpush.msra.mxu0 %v425
    %972 = vmatpush.msra.mxu0 %v421
    %973 = vmatpush.msra.mxu0 %v417
    %974 = vmatpush.msra.mxu0 %v413
    %975 = vmatpush.msra.mxu0 %v409
    %976 = vmatpush.msra.mxu0 %v405
    %977 = vmatpush.msra.mxu0 %v401
    %978 = vmatpush.msra.mxu0 %v397
    %979 = vmatpush.msra.mxu0 %v393
    %980 = vmatpush.msra.mxu0 %v389
    %981 = vmatpush.msra.mxu0 %v385
    %982 = vmatpush.msra.mxu0 %v381
    %983 = vmatmul.f32.gmra.mxu0 %v899
    %v984 = vpop.f32.mrf.mxu0
    %v985 = vadd.f32 0.0, %v984
    %986 = vdwg.mxu0
    %v987 = vadd.f32 %v903, %v925
    %v988 = vadd.f32 %v904, %v945
    %v989 = vadd.f32 %v905, %v965
    %v990 = vadd.f32 %v906, %v985
    %v991 = vxor.u32 %v987, 2147483648
    %v992 = vmul.f32 %v991, 1.442695
    %v993 = vpow.pop %v992
    %v994 = vadd.f32 %v993, 1.0
    %v995 = vrcp.pop %v994
    %v996 = vmul.f32 %v994, %v995
    %v997 = vsub.f32 1.0, %v996
    %v998 = vmul.f32 %v995, %v997
    %v999 = vadd.f32 %v995, %v998
    %vm1000 = vweird.f32 %v994
    %vm1001 = vweird.f32 %v995
    %vm1002 = vmor %vm1000, %vm1001
    %v1003 = vsel %vm1002, %v995, %v999
    %v1004 = vand.u32 2147483647, %v994
    %vm1005 = vcmp.eq.f32.partialorder %v1004, 8.507059e+37
    %v1006 = vand.u32 %v994, 2147483648
    %v1007 = vor.u32 1.1754944e-38, %v1006
    %v1008 = vsel %vm1005, %v1007, %v1003
    %v1009 = vmul.f32 1.0, %v1008
    %v1010 = vxor.u32 %v988, 2147483648
    %v1011 = vmul.f32 %v1010, 1.442695
    %v1012 = vpow.pop %v1011
    %v1013 = vadd.f32 %v1012, 1.0
    %v1014 = vrcp.pop %v1013
    %v1015 = vmul.f32 %v1013, %v1014
    %v1016 = vsub.f32 1.0, %v1015
    %v1017 = vmul.f32 %v1014, %v1016
    %v1018 = vadd.f32 %v1014, %v1017
    %vm1019 = vweird.f32 %v1013
    %vm1020 = vweird.f32 %v1014
    %vm1021 = vmor %vm1019, %vm1020
    %v1022 = vsel %vm1021, %v1014, %v1018
    %v1023 = vand.u32 2147483647, %v1013
    %vm1024 = vcmp.eq.f32.partialorder %v1023, 8.507059e+37
    %v1025 = vand.u32 %v1013, 2147483648
    %v1026 = vor.u32 1.1754944e-38, %v1025
    %v1027 = vsel %vm1024, %v1026, %v1022
    %v1028 = vmul.f32 1.0, %v1027
    %v1029 = vtanh.pop %v989
    %v1030 = vxor.u32 %v990, 2147483648
    %v1031 = vmul.f32 %v1030, 1.442695
    %v1032 = vpow.pop %v1031
    %v1033 = vadd.f32 %v1032, 1.0
    %v1034 = vrcp.pop %v1033
    %v1035 = vmul.f32 %v1033, %v1034
    %v1036 = vsub.f32 1.0, %v1035
    %v1037 = vmul.f32 %v1034, %v1036
    %v1038 = vadd.f32 %v1034, %v1037
    %vm1039 = vweird.f32 %v1033
    %vm1040 = vweird.f32 %v1034
    %vm1041 = vmor %vm1039, %vm1040
    %v1042 = vsel %vm1041, %v1034, %v1038
    %v1043 = vand.u32 2147483647, %v1033
    %vm1044 = vcmp.eq.f32.partialorder %v1043, 8.507059e+37
    %v1045 = vand.u32 %v1033, 2147483648
    %v1046 = vor.u32 1.1754944e-38, %v1045
    %v1047 = vsel %vm1044, %v1046, %v1042
    %v1048 = vmul.f32 1.0, %v1047
    %v1049 = vmul.f32 %v1028, %v897
    %v1050 = vmul.f32 %v1009, %v1029
    %v1051 = vadd.f32 %v1049, %v1050
    %v1052 = vtanh.pop %v1051
    %v1053 = vmul.f32 %v1048, %v1052
    %s1054 = scalar_lea.vmem [#allocation3], 24
    %1055 = vst [vmem:[%s1054] sm:$0xff] %v1053
    %s1056 = scalar_lea.vmem [#allocation2], 128
    %v1057 = vld [vmem:[%s1056] sm:$0xff]
    %v1058 = vld [vmem:[%s1056 + $0x8] sm:$0xff]
    %v1059 = vld [vmem:[%s1056 + $0x10] sm:$0xff]
    %v1060 = vld [vmem:[%s1056 + $0x18] sm:$0xff]
    %1061 = vmatpush.msra.mxu0 %v438
    %1062 = vmatpush.msra.mxu0 %v434
    %1063 = vmatpush.msra.mxu0 %v430
    %1064 = vmatpush.msra.mxu0 %v426
    %1065 = vmatpush.msra.mxu0 %v422
    %1066 = vmatpush.msra.mxu0 %v418
    %1067 = vmatpush.msra.mxu0 %v414
    %1068 = vmatpush.msra.mxu0 %v410
    %1069 = vmatpush.msra.mxu0 %v406
    %1070 = vmatpush.msra.mxu0 %v402
    %1071 = vmatpush.msra.mxu0 %v398
    %1072 = vmatpush.msra.mxu0 %v394
    %1073 = vmatpush.msra.mxu0 %v390
    %1074 = vmatpush.msra.mxu0 %v386
    %1075 = vmatpush.msra.mxu0 %v382
    %1076 = vmatpush.msra.mxu0 %v378
    %1077 = vmatmul.f32.gmra.mxu0 %v1053
    %v1078 = vpop.f32.mrf.mxu0
    %v1079 = vadd.f32 0.0, %v1078
    %1080 = vdwg.mxu0
    %1081 = vmatpush.msra.mxu0 %v439
    %1082 = vmatpush.msra.mxu0 %v435
    %1083 = vmatpush.msra.mxu0 %v431
    %1084 = vmatpush.msra.mxu0 %v427
    %1085 = vmatpush.msra.mxu0 %v423
    %1086 = vmatpush.msra.mxu0 %v419
    %1087 = vmatpush.msra.mxu0 %v415
    %1088 = vmatpush.msra.mxu0 %v411
    %1089 = vmatpush.msra.mxu0 %v407
    %1090 = vmatpush.msra.mxu0 %v403
    %1091 = vmatpush.msra.mxu0 %v399
    %1092 = vmatpush.msra.mxu0 %v395
    %1093 = vmatpush.msra.mxu0 %v391
    %1094 = vmatpush.msra.mxu0 %v387
    %1095 = vmatpush.msra.mxu0 %v383
    %1096 = vmatpush.msra.mxu0 %v379
    %1097 = vmatmul.f32.gmra.mxu0 %v1053
    %v1098 = vpop.f32.mrf.mxu0
    %v1099 = vadd.f32 0.0, %v1098
    %1100 = vdwg.mxu0
    %1101 = vmatpush.msra.mxu0 %v440
    %1102 = vmatpush.msra.mxu0 %v436
    %1103 = vmatpush.msra.mxu0 %v432
    %1104 = vmatpush.msra.mxu0 %v428
    %1105 = vmatpush.msra.mxu0 %v424
    %1106 = vmatpush.msra.mxu0 %v420
    %1107 = vmatpush.msra.mxu0 %v416
    %1108 = vmatpush.msra.mxu0 %v412
    %1109 = vmatpush.msra.mxu0 %v408
    %1110 = vmatpush.msra.mxu0 %v404
    %1111 = vmatpush.msra.mxu0 %v400
    %1112 = vmatpush.msra.mxu0 %v396
    %1113 = vmatpush.msra.mxu0 %v392
    %1114 = vmatpush.msra.mxu0 %v388
    %1115 = vmatpush.msra.mxu0 %v384
    %1116 = vmatpush.msra.mxu0 %v380
    %1117 = vmatmul.f32.gmra.mxu0 %v1053
    %v1118 = vpop.f32.mrf.mxu0
    %v1119 = vadd.f32 0.0, %v1118
    %1120 = vdwg.mxu0
    %1121 = vmatpush.msra.mxu0 %v441
    %1122 = vmatpush.msra.mxu0 %v437
    %1123 = vmatpush.msra.mxu0 %v433
    %1124 = vmatpush.msra.mxu0 %v429
    %1125 = vmatpush.msra.mxu0 %v425
    %1126 = vmatpush.msra.mxu0 %v421
    %1127 = vmatpush.msra.mxu0 %v417
    %1128 = vmatpush.msra.mxu0 %v413
    %1129 = vmatpush.msra.mxu0 %v409
    %1130 = vmatpush.msra.mxu0 %v405
    %1131 = vmatpush.msra.mxu0 %v401
    %1132 = vmatpush.msra.mxu0 %v397
    %1133 = vmatpush.msra.mxu0 %v393
    %1134 = vmatpush.msra.mxu0 %v389
    %1135 = vmatpush.msra.mxu0 %v385
    %1136 = vmatpush.msra.mxu0 %v381
    %1137 = vmatmul.f32.gmra.mxu0 %v1053
    %v1138 = vpop.f32.mrf.mxu0
    %v1139 = vadd.f32 0.0, %v1138
    %1140 = vdwg.mxu0
    %v1141 = vadd.f32 %v1057, %v1079
    %v1142 = vadd.f32 %v1058, %v1099
    %v1143 = vadd.f32 %v1059, %v1119
    %v1144 = vadd.f32 %v1060, %v1139
    %v1145 = vxor.u32 %v1141, 2147483648
    %v1146 = vmul.f32 %v1145, 1.442695
    %v1147 = vpow.pop %v1146
    %v1148 = vadd.f32 %v1147, 1.0
    %v1149 = vrcp.pop %v1148
    %v1150 = vmul.f32 %v1148, %v1149
    %v1151 = vsub.f32 1.0, %v1150
    %v1152 = vmul.f32 %v1149, %v1151
    %v1153 = vadd.f32 %v1149, %v1152
    %vm1154 = vweird.f32 %v1148
    %vm1155 = vweird.f32 %v1149
    %vm1156 = vmor %vm1154, %vm1155
    %v1157 = vsel %vm1156, %v1149, %v1153
    %v1158 = vand.u32 2147483647, %v1148
    %vm1159 = vcmp.eq.f32.partialorder %v1158, 8.507059e+37
    %v1160 = vand.u32 %v1148, 2147483648
    %v1161 = vor.u32 1.1754944e-38, %v1160
    %v1162 = vsel %vm1159, %v1161, %v1157
    %v1163 = vmul.f32 1.0, %v1162
    %v1164 = vxor.u32 %v1142, 2147483648
    %v1165 = vmul.f32 %v1164, 1.442695
    %v1166 = vpow.pop %v1165
    %v1167 = vadd.f32 %v1166, 1.0
    %v1168 = vrcp.pop %v1167
    %v1169 = vmul.f32 %v1167, %v1168
    %v1170 = vsub.f32 1.0, %v1169
    %v1171 = vmul.f32 %v1168, %v1170
    %v1172 = vadd.f32 %v1168, %v1171
    %vm1173 = vweird.f32 %v1167
    %vm1174 = vweird.f32 %v1168
    %vm1175 = vmor %vm1173, %vm1174
    %v1176 = vsel %vm1175, %v1168, %v1172
    %v1177 = vand.u32 2147483647, %v1167
    %vm1178 = vcmp.eq.f32.partialorder %v1177, 8.507059e+37
    %v1179 = vand.u32 %v1167, 2147483648
    %v1180 = vor.u32 1.1754944e-38, %v1179
    %v1181 = vsel %vm1178, %v1180, %v1176
    %v1182 = vmul.f32 1.0, %v1181
    %v1183 = vtanh.pop %v1143
    %v1184 = vxor.u32 %v1144, 2147483648
    %v1185 = vmul.f32 %v1184, 1.442695
    %v1186 = vpow.pop %v1185
    %v1187 = vadd.f32 %v1186, 1.0
    %v1188 = vrcp.pop %v1187
    %v1189 = vmul.f32 %v1187, %v1188
    %v1190 = vsub.f32 1.0, %v1189
    %v1191 = vmul.f32 %v1188, %v1190
    %v1192 = vadd.f32 %v1188, %v1191
    %vm1193 = vweird.f32 %v1187
    %vm1194 = vweird.f32 %v1188
    %vm1195 = vmor %vm1193, %vm1194
    %v1196 = vsel %vm1195, %v1188, %v1192
    %v1197 = vand.u32 2147483647, %v1187
    %vm1198 = vcmp.eq.f32.partialorder %v1197, 8.507059e+37
    %v1199 = vand.u32 %v1187, 2147483648
    %v1200 = vor.u32 1.1754944e-38, %v1199
    %v1201 = vsel %vm1198, %v1200, %v1196
    %v1202 = vmul.f32 1.0, %v1201
    %v1203 = vmul.f32 %v1182, %v1051
    %v1204 = vmul.f32 %v1163, %v1183
    %v1205 = vadd.f32 %v1203, %v1204
    %v1206 = vtanh.pop %v1205
    %v1207 = vmul.f32 %v1202, %v1206
    %s1208 = scalar_lea.vmem [#allocation3], 32
    %1209 = vst [vmem:[%s1208] sm:$0xff] %v1207
    %s1210 = scalar_lea.vmem [#allocation2], 160
    %v1211 = vld [vmem:[%s1210] sm:$0xff]
    %v1212 = vld [vmem:[%s1210 + $0x8] sm:$0xff]
    %v1213 = vld [vmem:[%s1210 + $0x10] sm:$0xff]
    %v1214 = vld [vmem:[%s1210 + $0x18] sm:$0xff]
    %1215 = vmatpush.msra.mxu0 %v438
    %1216 = vmatpush.msra.mxu0 %v434
    %1217 = vmatpush.msra.mxu0 %v430
    %1218 = vmatpush.msra.mxu0 %v426
    %1219 = vmatpush.msra.mxu0 %v422
    %1220 = vmatpush.msra.mxu0 %v418
    %1221 = vmatpush.msra.mxu0 %v414
    %1222 = vmatpush.msra.mxu0 %v410
    %1223 = vmatpush.msra.mxu0 %v406
    %1224 = vmatpush.msra.mxu0 %v402
    %1225 = vmatpush.msra.mxu0 %v398
    %1226 = vmatpush.msra.mxu0 %v394
    %1227 = vmatpush.msra.mxu0 %v390
    %1228 = vmatpush.msra.mxu0 %v386
    %1229 = vmatpush.msra.mxu0 %v382
    %1230 = vmatpush.msra.mxu0 %v378
    %1231 = vmatmul.f32.gmra.mxu0 %v1207
    %v1232 = vpop.f32.mrf.mxu0
    %v1233 = vadd.f32 0.0, %v1232
    %1234 = vdwg.mxu0
    %1235 = vmatpush.msra.mxu0 %v439
    %1236 = vmatpush.msra.mxu0 %v435
    %1237 = vmatpush.msra.mxu0 %v431
    %1238 = vmatpush.msra.mxu0 %v427
    %1239 = vmatpush.msra.mxu0 %v423
    %1240 = vmatpush.msra.mxu0 %v419
    %1241 = vmatpush.msra.mxu0 %v415
    %1242 = vmatpush.msra.mxu0 %v411
    %1243 = vmatpush.msra.mxu0 %v407
    %1244 = vmatpush.msra.mxu0 %v403
    %1245 = vmatpush.msra.mxu0 %v399
    %1246 = vmatpush.msra.mxu0 %v395
    %1247 = vmatpush.msra.mxu0 %v391
    %1248 = vmatpush.msra.mxu0 %v387
    %1249 = vmatpush.msra.mxu0 %v383
    %1250 = vmatpush.msra.mxu0 %v379
    %1251 = vmatmul.f32.gmra.mxu0 %v1207
    %v1252 = vpop.f32.mrf.mxu0
    %v1253 = vadd.f32 0.0, %v1252
    %1254 = vdwg.mxu0
    %1255 = vmatpush.msra.mxu0 %v440
    %1256 = vmatpush.msra.mxu0 %v436
    %1257 = vmatpush.msra.mxu0 %v432
    %1258 = vmatpush.msra.mxu0 %v428
    %1259 = vmatpush.msra.mxu0 %v424
    %1260 = vmatpush.msra.mxu0 %v420
    %1261 = vmatpush.msra.mxu0 %v416
    %1262 = vmatpush.msra.mxu0 %v412
    %1263 = vmatpush.msra.mxu0 %v408
    %1264 = vmatpush.msra.mxu0 %v404
    %1265 = vmatpush.msra.mxu0 %v400
    %1266 = vmatpush.msra.mxu0 %v396
    %1267 = vmatpush.msra.mxu0 %v392
    %1268 = vmatpush.msra.mxu0 %v388
    %1269 = vmatpush.msra.mxu0 %v384
    %1270 = vmatpush.msra.mxu0 %v380
    %1271 = vmatmul.f32.gmra.mxu0 %v1207
    %v1272 = vpop.f32.mrf.mxu0
    %v1273 = vadd.f32 0.0, %v1272
    %1274 = vdwg.mxu0
    %1275 = vmatpush.msra.mxu0 %v441
    %1276 = vmatpush.msra.mxu0 %v437
    %1277 = vmatpush.msra.mxu0 %v433
    %1278 = vmatpush.msra.mxu0 %v429
    %1279 = vmatpush.msra.mxu0 %v425
    %1280 = vmatpush.msra.mxu0 %v421
    %1281 = vmatpush.msra.mxu0 %v417
    %1282 = vmatpush.msra.mxu0 %v413
    %1283 = vmatpush.msra.mxu0 %v409
    %1284 = vmatpush.msra.mxu0 %v405
    %1285 = vmatpush.msra.mxu0 %v401
    %1286 = vmatpush.msra.mxu0 %v397
    %1287 = vmatpush.msra.mxu0 %v393
    %1288 = vmatpush.msra.mxu0 %v389
    %1289 = vmatpush.msra.mxu0 %v385
    %1290 = vmatpush.msra.mxu0 %v381
    %1291 = vmatmul.f32.gmra.mxu0 %v1207
    %v1292 = vpop.f32.mrf.mxu0
    %v1293 = vadd.f32 0.0, %v1292
    %1294 = vdwg.mxu0
    %v1295 = vadd.f32 %v1211, %v1233
    %v1296 = vadd.f32 %v1212, %v1253
    %v1297 = vadd.f32 %v1213, %v1273
    %v1298 = vadd.f32 %v1214, %v1293
    %v1299 = vxor.u32 %v1295, 2147483648
    %v1300 = vmul.f32 %v1299, 1.442695
    %v1301 = vpow.pop %v1300
    %v1302 = vadd.f32 %v1301, 1.0
    %v1303 = vrcp.pop %v1302
    %v1304 = vmul.f32 %v1302, %v1303
    %v1305 = vsub.f32 1.0, %v1304
    %v1306 = vmul.f32 %v1303, %v1305
    %v1307 = vadd.f32 %v1303, %v1306
    %vm1308 = vweird.f32 %v1302
    %vm1309 = vweird.f32 %v1303
    %vm1310 = vmor %vm1308, %vm1309
    %v1311 = vsel %vm1310, %v1303, %v1307
    %v1312 = vand.u32 2147483647, %v1302
    %vm1313 = vcmp.eq.f32.partialorder %v1312, 8.507059e+37
    %v1314 = vand.u32 %v1302, 2147483648
    %v1315 = vor.u32 1.1754944e-38, %v1314
    %v1316 = vsel %vm1313, %v1315, %v1311
    %v1317 = vmul.f32 1.0, %v1316
    %v1318 = vxor.u32 %v1296, 2147483648
    %v1319 = vmul.f32 %v1318, 1.442695
    %v1320 = vpow.pop %v1319
    %v1321 = vadd.f32 %v1320, 1.0
    %v1322 = vrcp.pop %v1321
    %v1323 = vmul.f32 %v1321, %v1322
    %v1324 = vsub.f32 1.0, %v1323
    %v1325 = vmul.f32 %v1322, %v1324
    %v1326 = vadd.f32 %v1322, %v1325
    %vm1327 = vweird.f32 %v1321
    %vm1328 = vweird.f32 %v1322
    %vm1329 = vmor %vm1327, %vm1328
    %v1330 = vsel %vm1329, %v1322, %v1326
    %v1331 = vand.u32 2147483647, %v1321
    %vm1332 = vcmp.eq.f32.partialorder %v1331, 8.507059e+37
    %v1333 = vand.u32 %v1321, 2147483648
    %v1334 = vor.u32 1.1754944e-38, %v1333
    %v1335 = vsel %vm1332, %v1334, %v1330
    %v1336 = vmul.f32 1.0, %v1335
    %v1337 = vtanh.pop %v1297
    %v1338 = vxor.u32 %v1298, 2147483648
    %v1339 = vmul.f32 %v1338, 1.442695
    %v1340 = vpow.pop %v1339
    %v1341 = vadd.f32 %v1340, 1.0
    %v1342 = vrcp.pop %v1341
    %v1343 = vmul.f32 %v1341, %v1342
    %v1344 = vsub.f32 1.0, %v1343
    %v1345 = vmul.f32 %v1342, %v1344
    %v1346 = vadd.f32 %v1342, %v1345
    %vm1347 = vweird.f32 %v1341
    %vm1348 = vweird.f32 %v1342
    %vm1349 = vmor %vm1347, %vm1348
    %v1350 = vsel %vm1349, %v1342, %v1346
    %v1351 = vand.u32 2147483647, %v1341
    %vm1352 = vcmp.eq.f32.partialorder %v1351, 8.507059e+37
    %v1353 = vand.u32 %v1341, 2147483648
    %v1354 = vor.u32 1.1754944e-38, %v1353
    %v1355 = vsel %vm1352, %v1354, %v1350
    %v1356 = vmul.f32 1.0, %v1355
    %v1357 = vmul.f32 %v1336, %v1205
    %v1358 = vmul.f32 %v1317, %v1337
    %v1359 = vadd.f32 %v1357, %v1358
    %v1360 = vtanh.pop %v1359
    %v1361 = vmul.f32 %v1356, %v1360
    %s1362 = scalar_lea.vmem [#allocation3], 40
    %1363 = vst [vmem:[%s1362] sm:$0xff] %v1361
    %s1364 = scalar_lea.vmem [#allocation2], 192
    %v1365 = vld [vmem:[%s1364] sm:$0xff]
    %v1366 = vld [vmem:[%s1364 + $0x8] sm:$0xff]
    %v1367 = vld [vmem:[%s1364 + $0x10] sm:$0xff]
    %v1368 = vld [vmem:[%s1364 + $0x18] sm:$0xff]
    %1369 = vmatpush.msra.mxu0 %v438
    %1370 = vmatpush.msra.mxu0 %v434
    %1371 = vmatpush.msra.mxu0 %v430
    %1372 = vmatpush.msra.mxu0 %v426
    %1373 = vmatpush.msra.mxu0 %v422
    %1374 = vmatpush.msra.mxu0 %v418
    %1375 = vmatpush.msra.mxu0 %v414
    %1376 = vmatpush.msra.mxu0 %v410
    %1377 = vmatpush.msra.mxu0 %v406
    %1378 = vmatpush.msra.mxu0 %v402
    %1379 = vmatpush.msra.mxu0 %v398
    %1380 = vmatpush.msra.mxu0 %v394
    %1381 = vmatpush.msra.mxu0 %v390
    %1382 = vmatpush.msra.mxu0 %v386
    %1383 = vmatpush.msra.mxu0 %v382
    %1384 = vmatpush.msra.mxu0 %v378
    %1385 = vmatmul.f32.gmra.mxu0 %v1361
    %v1386 = vpop.f32.mrf.mxu0
    %v1387 = vadd.f32 0.0, %v1386
    %1388 = vdwg.mxu0
    %1389 = vmatpush.msra.mxu0 %v439
    %1390 = vmatpush.msra.mxu0 %v435
    %1391 = vmatpush.msra.mxu0 %v431
    %1392 = vmatpush.msra.mxu0 %v427
    %1393 = vmatpush.msra.mxu0 %v423
    %1394 = vmatpush.msra.mxu0 %v419
    %1395 = vmatpush.msra.mxu0 %v415
    %1396 = vmatpush.msra.mxu0 %v411
    %1397 = vmatpush.msra.mxu0 %v407
    %1398 = vmatpush.msra.mxu0 %v403
    %1399 = vmatpush.msra.mxu0 %v399
    %1400 = vmatpush.msra.mxu0 %v395
    %1401 = vmatpush.msra.mxu0 %v391
    %1402 = vmatpush.msra.mxu0 %v387
    %1403 = vmatpush.msra.mxu0 %v383
    %1404 = vmatpush.msra.mxu0 %v379
    %1405 = vmatmul.f32.gmra.mxu0 %v1361
    %v1406 = vpop.f32.mrf.mxu0
    %v1407 = vadd.f32 0.0, %v1406
    %1408 = vdwg.mxu0
    %1409 = vmatpush.msra.mxu0 %v440
    %1410 = vmatpush.msra.mxu0 %v436
    %1411 = vmatpush.msra.mxu0 %v432
    %1412 = vmatpush.msra.mxu0 %v428
    %1413 = vmatpush.msra.mxu0 %v424
    %1414 = vmatpush.msra.mxu0 %v420
    %1415 = vmatpush.msra.mxu0 %v416
    %1416 = vmatpush.msra.mxu0 %v412
    %1417 = vmatpush.msra.mxu0 %v408
    %1418 = vmatpush.msra.mxu0 %v404
    %1419 = vmatpush.msra.mxu0 %v400
    %1420 = vmatpush.msra.mxu0 %v396
    %1421 = vmatpush.msra.mxu0 %v392
    %1422 = vmatpush.msra.mxu0 %v388
    %1423 = vmatpush.msra.mxu0 %v384
    %1424 = vmatpush.msra.mxu0 %v380
    %1425 = vmatmul.f32.gmra.mxu0 %v1361
    %v1426 = vpop.f32.mrf.mxu0
    %v1427 = vadd.f32 0.0, %v1426
    %1428 = vdwg.mxu0
    %1429 = vmatpush.msra.mxu0 %v441
    %1430 = vmatpush.msra.mxu0 %v437
    %1431 = vmatpush.msra.mxu0 %v433
    %1432 = vmatpush.msra.mxu0 %v429
    %1433 = vmatpush.msra.mxu0 %v425
    %1434 = vmatpush.msra.mxu0 %v421
    %1435 = vmatpush.msra.mxu0 %v417
    %1436 = vmatpush.msra.mxu0 %v413
    %1437 = vmatpush.msra.mxu0 %v409
    %1438 = vmatpush.msra.mxu0 %v405
    %1439 = vmatpush.msra.mxu0 %v401
    %1440 = vmatpush.msra.mxu0 %v397
    %1441 = vmatpush.msra.mxu0 %v393
    %1442 = vmatpush.msra.mxu0 %v389
    %1443 = vmatpush.msra.mxu0 %v385
    %1444 = vmatpush.msra.mxu0 %v381
    %1445 = vmatmul.f32.gmra.mxu0 %v1361
    %v1446 = vpop.f32.mrf.mxu0
    %v1447 = vadd.f32 0.0, %v1446
    %1448 = vdwg.mxu0
    %v1449 = vadd.f32 %v1365, %v1387
    %v1450 = vadd.f32 %v1366, %v1407
    %v1451 = vadd.f32 %v1367, %v1427
    %v1452 = vadd.f32 %v1368, %v1447
    %v1453 = vxor.u32 %v1449, 2147483648
    %v1454 = vmul.f32 %v1453, 1.442695
    %v1455 = vpow.pop %v1454
    %v1456 = vadd.f32 %v1455, 1.0
    %v1457 = vrcp.pop %v1456
    %v1458 = vmul.f32 %v1456, %v1457
    %v1459 = vsub.f32 1.0, %v1458
    %v1460 = vmul.f32 %v1457, %v1459
    %v1461 = vadd.f32 %v1457, %v1460
    %vm1462 = vweird.f32 %v1456
    %vm1463 = vweird.f32 %v1457
    %vm1464 = vmor %vm1462, %vm1463
    %v1465 = vsel %vm1464, %v1457, %v1461
    %v1466 = vand.u32 2147483647, %v1456
    %vm1467 = vcmp.eq.f32.partialorder %v1466, 8.507059e+37
    %v1468 = vand.u32 %v1456, 2147483648
    %v1469 = vor.u32 1.1754944e-38, %v1468
    %v1470 = vsel %vm1467, %v1469, %v1465
    %v1471 = vmul.f32 1.0, %v1470
    %v1472 = vxor.u32 %v1450, 2147483648
    %v1473 = vmul.f32 %v1472, 1.442695
    %v1474 = vpow.pop %v1473
    %v1475 = vadd.f32 %v1474, 1.0
    %v1476 = vrcp.pop %v1475
    %v1477 = vmul.f32 %v1475, %v1476
    %v1478 = vsub.f32 1.0, %v1477
    %v1479 = vmul.f32 %v1476, %v1478
    %v1480 = vadd.f32 %v1476, %v1479
    %vm1481 = vweird.f32 %v1475
    %vm1482 = vweird.f32 %v1476
    %vm1483 = vmor %vm1481, %vm1482
    %v1484 = vsel %vm1483, %v1476, %v1480
    %v1485 = vand.u32 2147483647, %v1475
    %vm1486 = vcmp.eq.f32.partialorder %v1485, 8.507059e+37
    %v1487 = vand.u32 %v1475, 2147483648
    %v1488 = vor.u32 1.1754944e-38, %v1487
    %v1489 = vsel %vm1486, %v1488, %v1484
    %v1490 = vmul.f32 1.0, %v1489
    %v1491 = vtanh.pop %v1451
    %v1492 = vxor.u32 %v1452, 2147483648
    %v1493 = vmul.f32 %v1492, 1.442695
    %v1494 = vpow.pop %v1493
    %v1495 = vadd.f32 %v1494, 1.0
    %v1496 = vrcp.pop %v1495
    %v1497 = vmul.f32 %v1495, %v1496
    %v1498 = vsub.f32 1.0, %v1497
    %v1499 = vmul.f32 %v1496, %v1498
    %v1500 = vadd.f32 %v1496, %v1499
    %vm1501 = vweird.f32 %v1495
    %vm1502 = vweird.f32 %v1496
    %vm1503 = vmor %vm1501, %vm1502
    %v1504 = vsel %vm1503, %v1496, %v1500
    %v1505 = vand.u32 2147483647, %v1495
    %vm1506 = vcmp.eq.f32.partialorder %v1505, 8.507059e+37
    %v1507 = vand.u32 %v1495, 2147483648
    %v1508 = vor.u32 1.1754944e-38, %v1507
    %v1509 = vsel %vm1506, %v1508, %v1504
    %v1510 = vmul.f32 1.0, %v1509
    %v1511 = vmul.f32 %v1490, %v1359
    %v1512 = vmul.f32 %v1471, %v1491
    %v1513 = vadd.f32 %v1511, %v1512
    %v1514 = vtanh.pop %v1513
    %v1515 = vmul.f32 %v1510, %v1514
    %s1516 = scalar_lea.vmem [#allocation3], 48
    %1517 = vst [vmem:[%s1516] sm:$0xff] %v1515
    %s1518 = scalar_lea.vmem [#allocation2], 224
    %v1519 = vld [vmem:[%s1518] sm:$0xff]
    %v1520 = vld [vmem:[%s1518 + $0x8] sm:$0xff]
    %v1521 = vld [vmem:[%s1518 + $0x10] sm:$0xff]
    %v1522 = vld [vmem:[%s1518 + $0x18] sm:$0xff]
    %1523 = vmatpush.msra.mxu0 %v438
    %1524 = vmatpush.msra.mxu0 %v434
    %1525 = vmatpush.msra.mxu0 %v430
    %1526 = vmatpush.msra.mxu0 %v426
    %1527 = vmatpush.msra.mxu0 %v422
    %1528 = vmatpush.msra.mxu0 %v418
    %1529 = vmatpush.msra.mxu0 %v414
    %1530 = vmatpush.msra.mxu0 %v410
    %1531 = vmatpush.msra.mxu0 %v406
    %1532 = vmatpush.msra.mxu0 %v402
    %1533 = vmatpush.msra.mxu0 %v398
    %1534 = vmatpush.msra.mxu0 %v394
    %1535 = vmatpush.msra.mxu0 %v390
    %1536 = vmatpush.msra.mxu0 %v386
    %1537 = vmatpush.msra.mxu0 %v382
    %1538 = vmatpush.msra.mxu0 %v378
    %1539 = vmatmul.f32.gmra.mxu0 %v1515
    %v1540 = vpop.f32.mrf.mxu0
    %v1541 = vadd.f32 0.0, %v1540
    %1542 = vdwg.mxu0
    %1543 = vmatpush.msra.mxu0 %v439
    %1544 = vmatpush.msra.mxu0 %v435
    %1545 = vmatpush.msra.mxu0 %v431
    %1546 = vmatpush.msra.mxu0 %v427
    %1547 = vmatpush.msra.mxu0 %v423
    %1548 = vmatpush.msra.mxu0 %v419
    %1549 = vmatpush.msra.mxu0 %v415
    %1550 = vmatpush.msra.mxu0 %v411
    %1551 = vmatpush.msra.mxu0 %v407
    %1552 = vmatpush.msra.mxu0 %v403
    %1553 = vmatpush.msra.mxu0 %v399
    %1554 = vmatpush.msra.mxu0 %v395
    %1555 = vmatpush.msra.mxu0 %v391
    %1556 = vmatpush.msra.mxu0 %v387
    %1557 = vmatpush.msra.mxu0 %v383
    %1558 = vmatpush.msra.mxu0 %v379
    %1559 = vmatmul.f32.gmra.mxu0 %v1515
    %v1560 = vpop.f32.mrf.mxu0
    %v1561 = vadd.f32 0.0, %v1560
    %1562 = vdwg.mxu0
    %1563 = vmatpush.msra.mxu0 %v440
    %1564 = vmatpush.msra.mxu0 %v436
    %1565 = vmatpush.msra.mxu0 %v432
    %1566 = vmatpush.msra.mxu0 %v428
    %1567 = vmatpush.msra.mxu0 %v424
    %1568 = vmatpush.msra.mxu0 %v420
    %1569 = vmatpush.msra.mxu0 %v416
    %1570 = vmatpush.msra.mxu0 %v412
    %1571 = vmatpush.msra.mxu0 %v408
    %1572 = vmatpush.msra.mxu0 %v404
    %1573 = vmatpush.msra.mxu0 %v400
    %1574 = vmatpush.msra.mxu0 %v396
    %1575 = vmatpush.msra.mxu0 %v392
    %1576 = vmatpush.msra.mxu0 %v388
    %1577 = vmatpush.msra.mxu0 %v384
    %1578 = vmatpush.msra.mxu0 %v380
    %1579 = vmatmul.f32.gmra.mxu0 %v1515
    %v1580 = vpop.f32.mrf.mxu0
    %v1581 = vadd.f32 0.0, %v1580
    %1582 = vdwg.mxu0
    %1583 = vmatpush.msra.mxu0 %v441
    %1584 = vmatpush.msra.mxu0 %v437
    %1585 = vmatpush.msra.mxu0 %v433
    %1586 = vmatpush.msra.mxu0 %v429
    %1587 = vmatpush.msra.mxu0 %v425
    %1588 = vmatpush.msra.mxu0 %v421
    %1589 = vmatpush.msra.mxu0 %v417
    %1590 = vmatpush.msra.mxu0 %v413
    %1591 = vmatpush.msra.mxu0 %v409
    %1592 = vmatpush.msra.mxu0 %v405
    %1593 = vmatpush.msra.mxu0 %v401
    %1594 = vmatpush.msra.mxu0 %v397
    %1595 = vmatpush.msra.mxu0 %v393
    %1596 = vmatpush.msra.mxu0 %v389
    %1597 = vmatpush.msra.mxu0 %v385
    %1598 = vmatpush.msra.mxu0 %v381
    %1599 = vmatmul.f32.gmra.mxu0 %v1515
    %v1600 = vpop.f32.mrf.mxu0
    %v1601 = vadd.f32 0.0, %v1600
    %1602 = vdwg.mxu0
    %v1603 = vadd.f32 %v1519, %v1541
    %v1604 = vadd.f32 %v1520, %v1561
    %v1605 = vadd.f32 %v1521, %v1581
    %v1606 = vadd.f32 %v1522, %v1601
    %v1607 = vxor.u32 %v1603, 2147483648
    %v1608 = vmul.f32 %v1607, 1.442695
    %v1609 = vpow.pop %v1608
    %v1610 = vadd.f32 %v1609, 1.0
    %v1611 = vrcp.pop %v1610
    %v1612 = vmul.f32 %v1610, %v1611
    %v1613 = vsub.f32 1.0, %v1612
    %v1614 = vmul.f32 %v1611, %v1613
    %v1615 = vadd.f32 %v1611, %v1614
    %vm1616 = vweird.f32 %v1610
    %vm1617 = vweird.f32 %v1611
    %vm1618 = vmor %vm1616, %vm1617
    %v1619 = vsel %vm1618, %v1611, %v1615
    %v1620 = vand.u32 2147483647, %v1610
    %vm1621 = vcmp.eq.f32.partialorder %v1620, 8.507059e+37
    %v1622 = vand.u32 %v1610, 2147483648
    %v1623 = vor.u32 1.1754944e-38, %v1622
    %v1624 = vsel %vm1621, %v1623, %v1619
    %v1625 = vmul.f32 1.0, %v1624
    %v1626 = vxor.u32 %v1604, 2147483648
    %v1627 = vmul.f32 %v1626, 1.442695
    %v1628 = vpow.pop %v1627
    %v1629 = vadd.f32 %v1628, 1.0
    %v1630 = vrcp.pop %v1629
    %v1631 = vmul.f32 %v1629, %v1630
    %v1632 = vsub.f32 1.0, %v1631
    %v1633 = vmul.f32 %v1630, %v1632
    %v1634 = vadd.f32 %v1630, %v1633
    %vm1635 = vweird.f32 %v1629
    %vm1636 = vweird.f32 %v1630
    %vm1637 = vmor %vm1635, %vm1636
    %v1638 = vsel %vm1637, %v1630, %v1634
    %v1639 = vand.u32 2147483647, %v1629
    %vm1640 = vcmp.eq.f32.partialorder %v1639, 8.507059e+37
    %v1641 = vand.u32 %v1629, 2147483648
    %v1642 = vor.u32 1.1754944e-38, %v1641
    %v1643 = vsel %vm1640, %v1642, %v1638
    %v1644 = vmul.f32 1.0, %v1643
    %v1645 = vtanh.pop %v1605
    %v1646 = vxor.u32 %v1606, 2147483648
    %v1647 = vmul.f32 %v1646, 1.442695
    %v1648 = vpow.pop %v1647
    %v1649 = vadd.f32 %v1648, 1.0
    %v1650 = vrcp.pop %v1649
    %v1651 = vmul.f32 %v1649, %v1650
    %v1652 = vsub.f32 1.0, %v1651
    %v1653 = vmul.f32 %v1650, %v1652
    %v1654 = vadd.f32 %v1650, %v1653
    %vm1655 = vweird.f32 %v1649
    %vm1656 = vweird.f32 %v1650
    %vm1657 = vmor %vm1655, %vm1656
    %v1658 = vsel %vm1657, %v1650, %v1654
    %v1659 = vand.u32 2147483647, %v1649
    %vm1660 = vcmp.eq.f32.partialorder %v1659, 8.507059e+37
    %v1661 = vand.u32 %v1649, 2147483648
    %v1662 = vor.u32 1.1754944e-38, %v1661
    %v1663 = vsel %vm1660, %v1662, %v1658
    %v1664 = vmul.f32 1.0, %v1663
    %v1665 = vmul.f32 %v1644, %v1513
    %v1666 = vmul.f32 %v1625, %v1645
    %v1667 = vadd.f32 %v1665, %v1666
    %v1668 = vtanh.pop %v1667
    %v1669 = vmul.f32 %v1664, %v1668
    %s1670 = scalar_lea.vmem [#allocation3], 56
    %1671 = vst [vmem:[%s1670] sm:$0xff] %v1669
    %v1672 = vld [vmem:[#allocation3] sm:$0xff]
    %v1673 = vld [vmem:[#allocation3 + $0x8] sm:$0xff]
    %v1674 = vld [vmem:[#allocation3 + $0x10] sm:$0xff]
    %v1675 = vld [vmem:[#allocation3 + $0x18] sm:$0xff]
    %v1676 = vld [vmem:[#allocation3 + $0x20] sm:$0xff]
    %v1677 = vld [vmem:[#allocation3 + $0x28] sm:$0xff]
    %v1678 = vld [vmem:[#allocation3 + $0x30] sm:$0xff]
    %v1679 = vld [vmem:[#allocation3 + $0x38] sm:$0xff]
    %v1680 = vld [vmem:[#allocation12] sm:$0xff]
    %v1681 = vld [vmem:[#allocation12 + $0x8] sm:$0xff]
    %v1682 = vld [vmem:[#allocation12 + $0x10] sm:$0xff]
    %v1683 = vld [vmem:[#allocation12 + $0x18] sm:$0xff]
    %v1684 = vld [vmem:[#allocation12 + $0x20] sm:$0xff]
    %v1685 = vld [vmem:[#allocation12 + $0x28] sm:$0xff]
    %v1686 = vld [vmem:[#allocation12 + $0x30] sm:$0xff]
    %v1687 = vld [vmem:[#allocation12 + $0x38] sm:$0xff]
    %v1688 = vld [vmem:[#allocation12 + $0x40] sm:$0xff]
    %v1689 = vld [vmem:[#allocation12 + $0x48] sm:$0xff]
    %v1690 = vld [vmem:[#allocation12 + $0x50] sm:$0xff]
    %v1691 = vld [vmem:[#allocation12 + $0x58] sm:$0xff]
    %v1692 = vld [vmem:[#allocation12 + $0x60] sm:$0xff]
    %v1693 = vld [vmem:[#allocation12 + $0x68] sm:$0xff]
    %v1694 = vld [vmem:[#allocation12 + $0x70] sm:$0xff]
    %v1695 = vld [vmem:[#allocation12 + $0x78] sm:$0xff]
    %v1696 = vld [vmem:[%s5] sm:$0x1]
    %v1698 = vperm.slane %v1696, 0
    %1700 = vmatpush.msra.mxu0 %v1695
    %1701 = vmatpush.msra.mxu0 %v1694
    %1702 = vmatpush.msra.mxu0 %v1693
    %1703 = vmatpush.msra.mxu0 %v1692
    %1704 = vmatpush.msra.mxu0 %v1691
    %1705 = vmatpush.msra.mxu0 %v1690
    %1706 = vmatpush.msra.mxu0 %v1689
    %1707 = vmatpush.msra.mxu0 %v1688
    %1708 = vmatpush.msra.mxu0 %v1687
    %1709 = vmatpush.msra.mxu0 %v1686
    %1710 = vmatpush.msra.mxu0 %v1685
    %1711 = vmatpush.msra.mxu0 %v1684
    %1712 = vmatpush.msra.mxu0 %v1683
    %1713 = vmatpush.msra.mxu0 %v1682
    %1714 = vmatpush.msra.mxu0 %v1681
    %1715 = vmatpush.msra.mxu0 %v1680
    %1716 = vmatmul.f32.gmra.mxu0 %v1672
    %v1717 = vpop.f32.mrf.mxu0
    %v1718 = vadd.f32 %v1698, %v1717
    %1719 = vmatmul.f32.gmra.mxu0 %v1673
    %v1720 = vpop.f32.mrf.mxu0
    %v1721 = vadd.f32 %v1698, %v1720
    %1722 = vmatmul.f32.gmra.mxu0 %v1674
    %v1723 = vpop.f32.mrf.mxu0
    %v1724 = vadd.f32 %v1698, %v1723
    %1725 = vmatmul.f32.gmra.mxu0 %v1675
    %v1726 = vpop.f32.mrf.mxu0
    %v1727 = vadd.f32 %v1698, %v1726
    %1728 = vmatmul.f32.gmra.mxu0 %v1676
    %v1729 = vpop.f32.mrf.mxu0
    %v1730 = vadd.f32 %v1698, %v1729
    %1731 = vmatmul.f32.gmra.mxu0 %v1677
    %v1732 = vpop.f32.mrf.mxu0
    %v1733 = vadd.f32 %v1698, %v1732
    %1734 = vmatmul.f32.gmra.mxu0 %v1678
    %v1735 = vpop.f32.mrf.mxu0
    %v1736 = vadd.f32 %v1698, %v1735
    %1737 = vmatmul.f32.gmra.mxu0 %v1679
    %v1738 = vpop.f32.mrf.mxu0
    %v1739 = vadd.f32 %v1698, %v1738
    %1740 = vdwg.mxu0
    %v1741 = vmax.f32 %v1718, 0.0
    %v1742 = vmax.f32 %v1721, 0.0
    %v1743 = vmax.f32 %v1724, 0.0
    %v1744 = vmax.f32 %v1727, 0.0
    %v1745 = vmax.f32 %v1730, 0.0
    %v1746 = vmax.f32 %v1733, 0.0
    %v1747 = vmax.f32 %v1736, 0.0
    %v1748 = vmax.f32 %v1739, 0.0
    %1749 = vst [vmem:[#allocation13] sm:$0xff] %v1741
    %1750 = vst [vmem:[#allocation13 + $0x8] sm:$0xff] %v1742
    %1751 = vst [vmem:[#allocation13 + $0x10] sm:$0xff] %v1743
    %1752 = vst [vmem:[#allocation13 + $0x18] sm:$0xff] %v1744
    %1753 = vst [vmem:[#allocation13 + $0x20] sm:$0xff] %v1745
    %1754 = vst [vmem:[#allocation13 + $0x28] sm:$0xff] %v1746
    %1755 = vst [vmem:[#allocation13 + $0x30] sm:$0xff] %v1747
    %1756 = vst [vmem:[#allocation13 + $0x38] sm:$0xff] %v1748
    // Predicated region
    $region46: #{tpu_custom_call.1} parent=1 // pred_check
      _
    $region47: #{tpu_custom_call.1} parent=1 // pred_check_branch
      %1758 = sbr.rel (0) target = $region49
    $region48: #{tpu_custom_call.1} parent=1 // pred_region
      %1760 = vsyncadd [#allocation6], 0
      %s1761 = sshll.u32 [#allocation13], 4
      %s1762 = int_to_ptr.vmem [resolvable:$true] %s1761
      %s1763 = sshll.u32 %s6, 4
      %s1764 = int_to_ptr.hbm [resolvable:$true] %s1763
      %1769 = dma.vmem_to_hbm [thread:$0]  %s1762, 1024, %s1764, [#allocation6], 128, 128, 8
    $region49: #{tpu_custom_call.1} parent=1 // pred_fallthru
      _
    // Predicated region
    $region50: #{tpu_custom_call.1} parent=1 // pred_check
      _
    $region51: #{tpu_custom_call.1} parent=1 // pred_check_branch
      %1771 = sbr.rel (0) target = $region53
    $region52: #{tpu_custom_call.1} parent=1 // pred_region
      %1773 = dma.done [#allocation6], 1024
    $region53: #{tpu_custom_call.1} parent=1 // pred_fallthru
      _
    %1774 = vsyncpa [#allocation5], 1
    %1775 = vsyncpa [#allocation8], 1
    %1776 = vsyncpa [#allocation11], 1
    %1777 = vsyncpa [#allocation6], 1

</llo_original>
